<compile_context>
chip_gen: v7x
topology: tpu7x:2x2x1
jax: 0.10.0
libtpu: 0.0.40
codegen_flags: <defaults>
</compile_context>

<pallas_src>
import functools

import jax
import jax.numpy as jnp
from jax.experimental import pallas as pl
from jax.experimental.pallas import tpu as pltpu

HIDDEN = 1024  # fixed by the module definition


def _round_up(x, m):
    return (x + m - 1) // m * m


def _mlp_kernel(x_ref, w1_ref, b1_ref, w2_ref, b2_ref, o_ref, acc_ref):
    """Grid = (batch tiles, K tiles); K is the reduction axis (last)."""
    k = pl.program_id(1)

    @pl.when(k == 0)
    def _():
        acc_ref[...] = jnp.zeros_like(acc_ref)

    # Partial first matmul on the MXU, f32 accumulation in VMEM scratch.
    acc_ref[...] += jnp.dot(x_ref[...], w1_ref[...],
                            preferred_element_type=jnp.float32)

    @pl.when(k == pl.num_programs(1) - 1)
    def _():
        h = jnp.maximum(acc_ref[...] + b1_ref[...], 0.0)        # bias + ReLU (f32)
        y = jnp.dot(h.astype(w2_ref.dtype), w2_ref[...],
                    preferred_element_type=jnp.float32)
        o_ref[...] = (y + b2_ref[...]).astype(o_ref.dtype)


def pupil_model_forward(x, w1, b1, w2, b2, *, tm=256, tk=512,
                        compute_dtype=None, use_pallas=None):
    """x: [batch, input_dim]; w1: [input_dim, 1024]; b1: [1024];
       w2: [1024, output_dim]; b2: [output_dim].  Returns [batch, output_dim]."""
    assert x.shape[-1] == w1.shape[0], (
        f"Expected input dim {w1.shape[0]}, got {x.shape[-1]}")
    assert w1.shape[1] == HIDDEN and w2.shape[0] == HIDDEN
    batch, input_dim = x.shape
    output_dim = w2.shape[1]
    out_dtype = x.dtype
    cd = jnp.dtype(compute_dtype) if compute_dtype is not None else jnp.dtype(x.dtype)

    # Tiny problems: a pallas_call is pure launch/DMA overhead; let XLA fuse it.
    if use_pallas is None:
        use_pallas = batch * max(input_dim, output_dim) >= (1 << 15)
    if not use_pallas:
        h = jnp.maximum(
            jnp.dot(x.astype(cd), w1.astype(cd),
                    preferred_element_type=jnp.float32) + b1.astype(jnp.float32),
            0.0)
        y = jnp.dot(h.astype(cd), w2.astype(cd),
                    preferred_element_type=jnp.float32) + b2.astype(jnp.float32)
        return y.astype(out_dtype)

    # ---- tile / padding selection -------------------------------------------
    m_align = 16 if cd == jnp.bfloat16 else 8          # sublane packing
    tm_eff = _round_up(min(tm, _round_up(batch, m_align)), m_align)
    m_pad = _round_up(batch, tm_eff)

    k_pad = _round_up(input_dim, 128)                  # lane width
    tk_eff = min(tk, k_pad)
    k_pad = _round_up(k_pad, tk_eff)

    n_pad = _round_up(output_dim, 128)                 # lane-dense output stores

    # ---- pad + cast operands (zero padding is exact for matmul) -------------
    xp = jnp.pad(x.astype(cd), ((0, m_pad - batch), (0, k_pad - input_dim)))
    w1p = jnp.pad(w1.astype(cd), ((0, k_pad - input_dim), (0, 0)))
    w2p = jnp.pad(w2.astype(cd), ((0, 0), (0, n_pad - output_dim)))
    b1p = b1.astype(jnp.float32).reshape(1, HIDDEN)
    b2p = jnp.pad(b2.astype(jnp.float32), (0, n_pad - output_dim)).reshape(1, n_pad)

    grid = (m_pad // tm_eff, k_pad // tk_eff)

    # ---- explicit VMEM budget (v5e scoped default 16 MiB, v7x physical 64 MiB)
    itm = jnp.dtype(cd).itemsize
    oitm = jnp.dtype(out_dtype).itemsize
    vmem_need = (2 * tm_eff * tk_eff * itm            # x tiles (double-buffered)
                 + 2 * tk_eff * HIDDEN * itm          # W1 tiles
                 + 2 * HIDDEN * n_pad * itm           # W2 (constant block)
                 + 2 * tm_eff * n_pad * oitm          # out tiles
                 + 2 * (HIDDEN + n_pad) * 4           # biases
                 + 2 * tm_eff * HIDDEN * 4)           # acc scratch + h temp
    vmem_limit = int(min(max(int(vmem_need * 1.5), 32 * 1024 * 1024),
                         64 * 1024 * 1024))

    flops = 2 * batch * input_dim * HIDDEN + 2 * batch * HIDDEN * output_dim
    bytes_accessed = int(xp.size * itm + w1p.size * itm + w2p.size * itm
                         + (HIDDEN + n_pad) * 4 + m_pad * n_pad * oitm)

    out = pl.pallas_call(
        _mlp_kernel,
        out_shape=jax.ShapeDtypeStruct((m_pad, n_pad), out_dtype),
        grid_spec=pltpu.PrefetchScalarGridSpec(
            num_scalar_prefetch=0,
            grid=grid,
            in_specs=[
                pl.BlockSpec((tm_eff, tk_eff), lambda i, k: (i, k)),   # x tile
                pl.BlockSpec((tk_eff, HIDDEN), lambda i, k: (k, 0)),   # W1 tile
                pl.BlockSpec((1, HIDDEN), lambda i, k: (0, 0)),        # b1
                pl.BlockSpec((HIDDEN, n_pad), lambda i, k: (0, 0)),    # W2
                pl.BlockSpec((1, n_pad), lambda i, k: (0, 0)),         # b2
            ],
            out_specs=pl.BlockSpec((tm_eff, n_pad), lambda i, k: (i, 0)),
            scratch_shapes=[pltpu.VMEM((tm_eff, HIDDEN), jnp.float32)],
        ),
        compiler_params=pltpu.CompilerParams(
            dimension_semantics=("parallel", "arbitrary"),
            vmem_limit_bytes=vmem_limit),
        cost_estimate=pl.CostEstimate(flops=flops, transcendentals=0,
                                      bytes_accessed=bytes_accessed),
    )(xp, w1p, b1p, w2p, b2p)

    return out[:batch, :output_dim]


def init_params(key, input_dim, output_dim, dtype=jnp.float32):
    """Deterministic init mimicking nn.Linear's U(-1/sqrt(fan_in), +1/sqrt(fan_in))."""
    k1, k2, k3, k4 = jax.random.split(key, 4)
    bound1 = 1.0 / (input_dim ** 0.5)
    bound2 = 1.0 / (HIDDEN ** 0.5)
    w1 = jax.random.uniform(k1, (input_dim, HIDDEN), dtype, -bound1, bound1)
    b1 = jax.random.uniform(k2, (HIDDEN,), dtype, -bound1, bound1)
    w2 = jax.random.uniform(k3, (HIDDEN, output_dim), dtype, -bound2, bound2)
    b2 = jax.random.uniform(k4, (output_dim,), dtype, -bound2, bound2)
    return w1, b1, w2, b2


if __name__ == "__main__":
    key = jax.random.PRNGKey(0)
    key_a, key_b = jax.random.split(key)

    # --- Case A: tiny fp32 problem (exercises batch/K/N padding paths) -------
    batch, input_dim, output_dim = 32, 96, 16
    kx, kp = jax.random.split(key_a)
    x = jax.random.normal(kx, (batch, input_dim), jnp.float32)
    w1, b1, w2, b2 = init_params(kp, input_dim, output_dim)

    fwd = jax.jit(functools.partial(pupil_model_forward, use_pallas=True))
    out = jax.block_until_ready(fwd(x, w1, b1, w2, b2))
    ref = jnp.maximum(x @ w1 + b1, 0.0) @ w2 + b2
    assert out.shape == (batch, output_dim)
    assert jnp.allclose(out, ref, atol=1e-4, rtol=1e-4), "fp32 mismatch vs reference"

    # --- Case B: multi-tile grid + K reduction + bf16 compute path -----------
    batch, input_dim, output_dim = 512, 1280, 24
    kx, kp = jax.random.split(key_b)
    x = jax.random.normal(kx, (batch, input_dim), jnp.float32)
    w1, b1, w2, b2 = init_params(kp, input_dim, output_dim)

    fwd_bf16 = jax.jit(functools.partial(
        pupil_model_forward, tm=256, tk=512,
        compute_dtype=jnp.bfloat16, use_pallas=True))
    out = jax.block_until_ready(fwd_bf16(x, w1, b1, w2, b2))

    cd = jnp.bfloat16
    h = jnp.dot(x.astype(cd), w1.astype(cd),
                preferred_element_type=jnp.float32) + b1
    h = jnp.maximum(h, 0.0)
    ref = jnp.dot(h.astype(cd), w2.astype(cd),
                  preferred_element_type=jnp.float32) + b2
    assert out.shape == (batch, output_dim)
    assert jnp.allclose(out, ref, atol=2e-2, rtol=2e-2), "bf16 mismatch vs reference"

    print("KERNEL_OK")
</pallas_src>

<mosaic_0001>
module attributes {stable_mosaic.version = 11 : i64} {
  func.func @_mlp_kernel(%arg0: i32, %arg1: i32, %arg2: memref<32x128xf32, #tpu.memory_space<vmem>>, %arg3: memref<128x1024xf32, #tpu.memory_space<vmem>>, %arg4: memref<1x1024xf32, #tpu.memory_space<vmem>>, %arg5: memref<1024x128xf32, #tpu.memory_space<vmem>>, %arg6: memref<1x128xf32, #tpu.memory_space<vmem>>, %arg7: memref<32x128xf32, #tpu.memory_space<vmem>>, %arg8: memref<32x1024xf32, #tpu.memory_space<vmem>>) attributes {dimension_semantics = [#tpu.dimension_semantics<parallel>, #tpu.dimension_semantics<arbitrary>], iteration_bounds = array<i64: 1, 1>, scalar_prefetch = 0 : i64, scratch_operands = 1 : i64, tpu.core_type = #tpu.core_type<tc>, window_params = [{transform_indices = @transform_0, window_bounds = array<i64: 32, 128>}, {transform_indices = @transform_1, window_bounds = array<i64: 128, 1024>}, {pipeline_mode = #tpu.pipeline_mode<synchronous>, transform_indices = @transform_2, window_bounds = array<i64: 1, 1024>}, {pipeline_mode = #tpu.pipeline_mode<synchronous>, transform_indices = @transform_3, window_bounds = array<i64: 1024, 128>}, {pipeline_mode = #tpu.pipeline_mode<synchronous>, transform_indices = @transform_4, window_bounds = array<i64: 1, 128>}, {transform_indices = @transform_5, window_bounds = array<i64: 32, 128>}]} {
    %c0_i32 = arith.constant 0 : i32
    %0 = arith.cmpi eq, %arg1, %c0_i32 : i32
    %1 = arith.extui %0 : i1 to i32
    %c0_i32_0 = arith.constant 0 : i32
    %2 = arith.cmpi ne, %1, %c0_i32_0 : i32
    scf.if %2 {
      %cst_10 = arith.constant 0.000000e+00 : f32
      %12 = vector.broadcast %cst_10 : f32 to vector<32x1024xf32>
      %c0_11 = arith.constant 0 : index
      %c0_12 = arith.constant 0 : index
      %13 = vector.load %arg8[%c0_11, %c0_12] : memref<32x1024xf32, #tpu.memory_space<vmem>>, vector<32x1024xf32>
      tpu.vector_store %arg8[%c0_11, %c0_12], %12 {strides = array<i32>} : memref<32x1024xf32, #tpu.memory_space<vmem>>, vector<32x1024xf32>,
    } else {
    }
    %c0 = arith.constant 0 : index
    %c0_1 = arith.constant 0 : index
    %3 = vector.load %arg8[%c0, %c0_1] : memref<32x1024xf32, #tpu.memory_space<vmem>>, vector<32x1024xf32>
    %c0_2 = arith.constant 0 : index
    %c0_3 = arith.constant 0 : index
    %4 = vector.load %arg2[%c0_2, %c0_3] : memref<32x128xf32, #tpu.memory_space<vmem>>, vector<32x128xf32>
    %c0_4 = arith.constant 0 : index
    %c0_5 = arith.constant 0 : index
    %5 = vector.load %arg3[%c0_4, %c0_5] : memref<128x1024xf32, #tpu.memory_space<vmem>>, vector<128x1024xf32>
    %cst = arith.constant dense<0.000000e+00> : vector<32x1024xf32>
    %6 = tpu.matmul %4, %5, %cst {dimension_numbers = #tpu.dot_dimension_numbers<[1], [0], [0], [1], [0, 0, 1, 1], [], []>} : vector<32x128xf32>, vector<128x1024xf32>, vector<32x1024xf32> -> vector<32x1024xf32>
    %7 = arith.addf %3, %6 : vector<32x1024xf32>
    %c0_6 = arith.constant 0 : index
    %c0_7 = arith.constant 0 : index
    %8 = vector.load %arg8[%c0_6, %c0_7] : memref<32x1024xf32, #tpu.memory_space<vmem>>, vector<32x1024xf32>
    tpu.vector_store %arg8[%c0_6, %c0_7], %7 {strides = array<i32>} : memref<32x1024xf32, #tpu.memory_space<vmem>>, vector<32x1024xf32>,
    %c0_i32_8 = arith.constant 0 : i32
    %9 = arith.cmpi eq, %arg1, %c0_i32_8 : i32
    %10 = arith.extui %9 : i1 to i32
    %c0_i32_9 = arith.constant 0 : i32
    %11 = arith.cmpi ne, %10, %c0_i32_9 : i32
    scf.if %11 {
      %c0_10 = arith.constant 0 : index
      %c0_11 = arith.constant 0 : index
      %12 = vector.load %arg8[%c0_10, %c0_11] : memref<32x1024xf32, #tpu.memory_space<vmem>>, vector<32x1024xf32>
      %c0_12 = arith.constant 0 : index
      %c0_13 = arith.constant 0 : index
      %13 = vector.load %arg4[%c0_12, %c0_13] : memref<1x1024xf32, #tpu.memory_space<vmem>>, vector<1x1024xf32>
      %14 = vector.broadcast %13 : vector<1x1024xf32> to vector<32x1024xf32>
      %15 = arith.addf %12, %14 : vector<32x1024xf32>
      %cst_14 = arith.constant 0.000000e+00 : f32
      %16 = vector.broadcast %cst_14 : f32 to vector<32x1024xf32>
      %17 = arith.maximumf %15, %16 : vector<32x1024xf32>
      %c0_15 = arith.constant 0 : index
      %c0_16 = arith.constant 0 : index
      %18 = vector.load %arg5[%c0_15, %c0_16] : memref<1024x128xf32, #tpu.memory_space<vmem>>, vector<1024x128xf32>
      %cst_17 = arith.constant dense<0.000000e+00> : vector<32x128xf32>
      %19 = tpu.matmul %17, %18, %cst_17 {dimension_numbers = #tpu.dot_dimension_numbers<[1], [0], [0], [1], [0, 0, 1, 1], [], []>} : vector<32x1024xf32>, vector<1024x128xf32>, vector<32x128xf32> -> vector<32x128xf32>
      %c0_18 = arith.constant 0 : index
      %c0_19 = arith.constant 0 : index
      %20 = vector.load %arg6[%c0_18, %c0_19] : memref<1x128xf32, #tpu.memory_space<vmem>>, vector<1x128xf32>
      %21 = vector.broadcast %20 : vector<1x128xf32> to vector<32x128xf32>
      %22 = arith.addf %19, %21 : vector<32x128xf32>
      %c0_20 = arith.constant 0 : index
      %c0_21 = arith.constant 0 : index
      %23 = vector.load %arg7[%c0_20, %c0_21] : memref<32x128xf32, #tpu.memory_space<vmem>>, vector<32x128xf32>
      tpu.vector_store %arg7[%c0_20, %c0_21], %22 {strides = array<i32>} : memref<32x128xf32, #tpu.memory_space<vmem>>, vector<32x128xf32>,
    } else {
    }
    return
  }
  func.func @transform_0(%arg0: i32, %arg1: i32) -> (i32, i32) {
    %c0_i32 = arith.constant 0 : i32
    return %arg0, %arg1 : i32, i32
  }
  func.func @transform_1(%arg0: i32, %arg1: i32) -> (i32, i32) {
    %c0_i32 = arith.constant 0 : i32
    %c0_i32_0 = arith.constant 0 : i32
    return %arg1, %c0_i32 : i32, i32
  }
  func.func @transform_2(%arg0: i32, %arg1: i32) -> (i32, i32) {
    %c0_i32 = arith.constant 0 : i32
    %c0_i32_0 = arith.constant 0 : i32
    %c0_i32_1 = arith.constant 0 : i32
    return %c0_i32, %c0_i32_0 : i32, i32
  }
  func.func @transform_3(%arg0: i32, %arg1: i32) -> (i32, i32) {
    %c0_i32 = arith.constant 0 : i32
    %c0_i32_0 = arith.constant 0 : i32
    %c0_i32_1 = arith.constant 0 : i32
    return %c0_i32, %c0_i32_0 : i32, i32
  }
  func.func @transform_4(%arg0: i32, %arg1: i32) -> (i32, i32) {
    %c0_i32 = arith.constant 0 : i32
    %c0_i32_0 = arith.constant 0 : i32
    %c0_i32_1 = arith.constant 0 : i32
    return %c0_i32, %c0_i32_0 : i32, i32
  }
  func.func @transform_5(%arg0: i32, %arg1: i32) -> (i32, i32) {
    %c0_i32 = arith.constant 0 : i32
    %c0_i32_0 = arith.constant 0 : i32
    return %arg0, %c0_i32 : i32, i32
  }
}

</mosaic_0001>

<llo_original>
// kernel: pupil_model_forward.1
$region0: #{pupil_model_forward.1}
  #allocation0 [shape = 'u32[]', space=smem, size = 0x4, offset = 0x4, fixed_abs, tag = 'smem constant byte address 0x4 - core index']
  #allocation1 [shape = 'u32[144,128]{1,0:T(1,128)}', space=vmem, size = 0x12000, scoped, tag = 'internal scratch']
  #allocation2 [shape = 'f32[32,1024]{1,0:T(8,128)}', space=vmem, size = 0x20000, scoped, tag = 'scratch operand']
  %s0 = inlined_call_operand.vmem [shape: f32[32,128], index: 0, kind: input, shape index: {}]
  %s1 = inlined_call_operand.vmem [shape: f32[128,1024], index: 1, kind: input, shape index: {}]
  %s2 = inlined_call_operand.vmem [shape: f32[1,1024], index: 2, kind: input, shape index: {}]
  %s3 = inlined_call_operand.vmem [shape: f32[1024,128], index: 3, kind: input, shape index: {}]
  %s4 = inlined_call_operand.vmem [shape: f32[1,128], index: 4, kind: input, shape index: {}]
  %s5 = inlined_call_operand.vmem [shape: f32[32,128], index: 5, kind: output, shape index: {}]
  %s6 = sld [smem:[#allocation0]]
  $region38: #{pupil_model_forward.1} parent=0
    _
  %s8 = ssub.s32 1, %s6
  %s9 = scalar_select 0, %s8, %s6
  // Predicated region
  $region2: #{pupil_model_forward.1} parent=0 // pred_check
    _
  $region3: #{pupil_model_forward.1} parent=0 // pred_check_branch
    %11 = sbr.rel (0) target = $region5
  $region4: #{pupil_model_forward.1} parent=0 // pred_region
    _
  $region5: #{pupil_model_forward.1} parent=0 // pred_fallthru
    _
  // Predicated region
  $region6: #{pupil_model_forward.1} parent=0 // pred_check
    _
  $region7: #{pupil_model_forward.1} parent=0 // pred_check_branch
    %13 = sbr.rel (0) target = $region9
  $region8: #{pupil_model_forward.1} parent=0 // pred_region
    _
  $region9: #{pupil_model_forward.1} parent=0 // pred_fallthru
    _
  // Predicated region
  $region10: #{pupil_model_forward.1} parent=0 // pred_check
    _
  $region11: #{pupil_model_forward.1} parent=0 // pred_check_branch
    %15 = sbr.rel (0) target = $region13
  $region12: #{pupil_model_forward.1} parent=0 // pred_region
    _
  $region13: #{pupil_model_forward.1} parent=0 // pred_fallthru
    _
  // Predicated region
  $region14: #{pupil_model_forward.1} parent=0 // pred_check
    _
  $region15: #{pupil_model_forward.1} parent=0 // pred_check_branch
    %17 = sbr.rel (0) target = $region17
  $region16: #{pupil_model_forward.1} parent=0 // pred_region
    _
  $region17: #{pupil_model_forward.1} parent=0 // pred_fallthru
    _
  // Predicated region
  $region18: #{pupil_model_forward.1} parent=0 // pred_check
    _
  $region19: #{pupil_model_forward.1} parent=0 // pred_check_branch
    %19 = sbr.rel (0) target = $region21
  $region20: #{pupil_model_forward.1} parent=0 // pred_region
    _
  $region21: #{pupil_model_forward.1} parent=0 // pred_fallthru
    _
  %p20 = scmp.eq.s32.totalorder 0, 0
  // Predicated region
  $region22: #{pupil_model_forward.1} parent=0 // pred_check
    %p21 = pneg %p20
  $region23: #{pupil_model_forward.1} parent=0 // pred_check_branch
    %23 = sbr.rel (%p21) target = $region25
  $region24: #{pupil_model_forward.1} parent=0 // pred_region
    %24 = vst [vmem:[#allocation2] sm:$0xff] 0.0
    %25 = vst [vmem:[#allocation2 + $0x8] sm:$0xff] 0.0
    %26 = vst [vmem:[#allocation2 + $0x10] sm:$0xff] 0.0
    %27 = vst [vmem:[#allocation2 + $0x18] sm:$0xff] 0.0
    %28 = vst [vmem:[#allocation2 + $0x20] sm:$0xff] 0.0
    %29 = vst [vmem:[#allocation2 + $0x28] sm:$0xff] 0.0
    %30 = vst [vmem:[#allocation2 + $0x30] sm:$0xff] 0.0
    %31 = vst [vmem:[#allocation2 + $0x38] sm:$0xff] 0.0
    %32 = vst [vmem:[#allocation2 + $0x40] sm:$0xff] 0.0
    %33 = vst [vmem:[#allocation2 + $0x48] sm:$0xff] 0.0
    %34 = vst [vmem:[#allocation2 + $0x50] sm:$0xff] 0.0
    %35 = vst [vmem:[#allocation2 + $0x58] sm:$0xff] 0.0
    %36 = vst [vmem:[#allocation2 + $0x60] sm:$0xff] 0.0
    %37 = vst [vmem:[#allocation2 + $0x68] sm:$0xff] 0.0
    %38 = vst [vmem:[#allocation2 + $0x70] sm:$0xff] 0.0
    %39 = vst [vmem:[#allocation2 + $0x78] sm:$0xff] 0.0
    %40 = vst [vmem:[#allocation2 + $0x80] sm:$0xff] 0.0
    %41 = vst [vmem:[#allocation2 + $0x88] sm:$0xff] 0.0
    %42 = vst [vmem:[#allocation2 + $0x90] sm:$0xff] 0.0
    %43 = vst [vmem:[#allocation2 + $0x98] sm:$0xff] 0.0
    %44 = vst [vmem:[#allocation2 + $0xa0] sm:$0xff] 0.0
    %45 = vst [vmem:[#allocation2 + $0xa8] sm:$0xff] 0.0
    %46 = vst [vmem:[#allocation2 + $0xb0] sm:$0xff] 0.0
    %47 = vst [vmem:[#allocation2 + $0xb8] sm:$0xff] 0.0
    %48 = vst [vmem:[#allocation2 + $0xc0] sm:$0xff] 0.0
    %49 = vst [vmem:[#allocation2 + $0xc8] sm:$0xff] 0.0
    %50 = vst [vmem:[#allocation2 + $0xd0] sm:$0xff] 0.0
    %51 = vst [vmem:[#allocation2 + $0xd8] sm:$0xff] 0.0
    %52 = vst [vmem:[#allocation2 + $0xe0] sm:$0xff] 0.0
    %53 = vst [vmem:[#allocation2 + $0xe8] sm:$0xff] 0.0
    %54 = vst [vmem:[#allocation2 + $0xf0] sm:$0xff] 0.0
    %55 = vst [vmem:[#allocation2 + $0xf8] sm:$0xff] 0.0
  $region25: #{pupil_model_forward.1} parent=0 // pred_fallthru
    _
  %v56 = vld [vmem:[#allocation2] sm:$0xff]
  %v57 = vld [vmem:[#allocation2 + $0x8] sm:$0xff]
  %v58 = vld [vmem:[#allocation2 + $0x10] sm:$0xff]
  %v59 = vld [vmem:[#allocation2 + $0x18] sm:$0xff]
  %v60 = vld [vmem:[#allocation2 + $0x20] sm:$0xff]
  %v61 = vld [vmem:[#allocation2 + $0x28] sm:$0xff]
  %v62 = vld [vmem:[#allocation2 + $0x30] sm:$0xff]
  %v63 = vld [vmem:[#allocation2 + $0x38] sm:$0xff]
  %v64 = vld [vmem:[#allocation2 + $0x40] sm:$0xff]
  %v65 = vld [vmem:[#allocation2 + $0x48] sm:$0xff]
  %v66 = vld [vmem:[#allocation2 + $0x50] sm:$0xff]
  %v67 = vld [vmem:[#allocation2 + $0x58] sm:$0xff]
  %v68 = vld [vmem:[#allocation2 + $0x60] sm:$0xff]
  %v69 = vld [vmem:[#allocation2 + $0x68] sm:$0xff]
  %v70 = vld [vmem:[#allocation2 + $0x70] sm:$0xff]
  %v71 = vld [vmem:[#allocation2 + $0x78] sm:$0xff]
  %v72 = vld [vmem:[#allocation2 + $0x80] sm:$0xff]
  %v73 = vld [vmem:[#allocation2 + $0x88] sm:$0xff]
  %v74 = vld [vmem:[#allocation2 + $0x90] sm:$0xff]
  %v75 = vld [vmem:[#allocation2 + $0x98] sm:$0xff]
  %v76 = vld [vmem:[#allocation2 + $0xa0] sm:$0xff]
  %v77 = vld [vmem:[#allocation2 + $0xa8] sm:$0xff]
  %v78 = vld [vmem:[#allocation2 + $0xb0] sm:$0xff]
  %v79 = vld [vmem:[#allocation2 + $0xb8] sm:$0xff]
  %v80 = vld [vmem:[#allocation2 + $0xc0] sm:$0xff]
  %v81 = vld [vmem:[#allocation2 + $0xc8] sm:$0xff]
  %v82 = vld [vmem:[#allocation2 + $0xd0] sm:$0xff]
  %v83 = vld [vmem:[#allocation2 + $0xd8] sm:$0xff]
  %v84 = vld [vmem:[#allocation2 + $0xe0] sm:$0xff]
  %v85 = vld [vmem:[#allocation2 + $0xe8] sm:$0xff]
  %v86 = vld [vmem:[#allocation2 + $0xf0] sm:$0xff]
  %v87 = vld [vmem:[#allocation2 + $0xf8] sm:$0xff]
  %v88 = vld [vmem:[%s0] sm:$0xff]
  %v89 = vld [vmem:[%s0 + $0x8] sm:$0xff]
  %v90 = vld [vmem:[%s0 + $0x10] sm:$0xff]
  %v91 = vld [vmem:[%s0 + $0x18] sm:$0xff]
  %v92 = vld [vmem:[%s1] sm:$0xff]
  %v93 = vld [vmem:[%s1 + $0x8] sm:$0xff]
  %v94 = vld [vmem:[%s1 + $0x10] sm:$0xff]
  %v95 = vld [vmem:[%s1 + $0x18] sm:$0xff]
  %v96 = vld [vmem:[%s1 + $0x20] sm:$0xff]
  %v97 = vld [vmem:[%s1 + $0x28] sm:$0xff]
  %v98 = vld [vmem:[%s1 + $0x30] sm:$0xff]
  %v99 = vld [vmem:[%s1 + $0x38] sm:$0xff]
  %v100 = vld [vmem:[%s1 + $0x40] sm:$0xff]
  %v101 = vld [vmem:[%s1 + $0x48] sm:$0xff]
  %v102 = vld [vmem:[%s1 + $0x50] sm:$0xff]
  %v103 = vld [vmem:[%s1 + $0x58] sm:$0xff]
  %v104 = vld [vmem:[%s1 + $0x60] sm:$0xff]
  %v105 = vld [vmem:[%s1 + $0x68] sm:$0xff]
  %v106 = vld [vmem:[%s1 + $0x70] sm:$0xff]
  %v107 = vld [vmem:[%s1 + $0x78] sm:$0xff]
  %v108 = vld [vmem:[%s1 + $0x80] sm:$0xff]
  %v109 = vld [vmem:[%s1 + $0x88] sm:$0xff]
  %v110 = vld [vmem:[%s1 + $0x90] sm:$0xff]
  %v111 = vld [vmem:[%s1 + $0x98] sm:$0xff]
  %v112 = vld [vmem:[%s1 + $0xa0] sm:$0xff]
  %v113 = vld [vmem:[%s1 + $0xa8] sm:$0xff]
  %v114 = vld [vmem:[%s1 + $0xb0] sm:$0xff]
  %v115 = vld [vmem:[%s1 + $0xb8] sm:$0xff]
  %v116 = vld [vmem:[%s1 + $0xc0] sm:$0xff]
  %v117 = vld [vmem:[%s1 + $0xc8] sm:$0xff]
  %v118 = vld [vmem:[%s1 + $0xd0] sm:$0xff]
  %v119 = vld [vmem:[%s1 + $0xd8] sm:$0xff]
  %v120 = vld [vmem:[%s1 + $0xe0] sm:$0xff]
  %v121 = vld [vmem:[%s1 + $0xe8] sm:$0xff]
  %v122 = vld [vmem:[%s1 + $0xf0] sm:$0xff]
  %v123 = vld [vmem:[%s1 + $0xf8] sm:$0xff]
  %v124 = vld [vmem:[%s1 + $0x100] sm:$0xff]
  %v125 = vld [vmem:[%s1 + $0x108] sm:$0xff]
  %v126 = vld [vmem:[%s1 + $0x110] sm:$0xff]
  %v127 = vld [vmem:[%s1 + $0x118] sm:$0xff]
  %v128 = vld [vmem:[%s1 + $0x120] sm:$0xff]
  %v129 = vld [vmem:[%s1 + $0x128] sm:$0xff]
  %v130 = vld [vmem:[%s1 + $0x130] sm:$0xff]
  %v131 = vld [vmem:[%s1 + $0x138] sm:$0xff]
  %v132 = vld [vmem:[%s1 + $0x140] sm:$0xff]
  %v133 = vld [vmem:[%s1 + $0x148] sm:$0xff]
  %v134 = vld [vmem:[%s1 + $0x150] sm:$0xff]
  %v135 = vld [vmem:[%s1 + $0x158] sm:$0xff]
  %v136 = vld [vmem:[%s1 + $0x160] sm:$0xff]
  %v137 = vld [vmem:[%s1 + $0x168] sm:$0xff]
  %v138 = vld [vmem:[%s1 + $0x170] sm:$0xff]
  %v139 = vld [vmem:[%s1 + $0x178] sm:$0xff]
  %v140 = vld [vmem:[%s1 + $0x180] sm:$0xff]
  %v141 = vld [vmem:[%s1 + $0x188] sm:$0xff]
  %v142 = vld [vmem:[%s1 + $0x190] sm:$0xff]
  %v143 = vld [vmem:[%s1 + $0x198] sm:$0xff]
  %v144 = vld [vmem:[%s1 + $0x1a0] sm:$0xff]
  %v145 = vld [vmem:[%s1 + $0x1a8] sm:$0xff]
  %v146 = vld [vmem:[%s1 + $0x1b0] sm:$0xff]
  %v147 = vld [vmem:[%s1 + $0x1b8] sm:$0xff]
  %v148 = vld [vmem:[%s1 + $0x1c0] sm:$0xff]
  %v149 = vld [vmem:[%s1 + $0x1c8] sm:$0xff]
  %v150 = vld [vmem:[%s1 + $0x1d0] sm:$0xff]
  %v151 = vld [vmem:[%s1 + $0x1d8] sm:$0xff]
  %v152 = vld [vmem:[%s1 + $0x1e0] sm:$0xff]
  %v153 = vld [vmem:[%s1 + $0x1e8] sm:$0xff]
  %v154 = vld [vmem:[%s1 + $0x1f0] sm:$0xff]
  %v155 = vld [vmem:[%s1 + $0x1f8] sm:$0xff]
  %v156 = vld [vmem:[%s1 + $0x200] sm:$0xff]
  %v157 = vld [vmem:[%s1 + $0x208] sm:$0xff]
  %v158 = vld [vmem:[%s1 + $0x210] sm:$0xff]
  %v159 = vld [vmem:[%s1 + $0x218] sm:$0xff]
  %v160 = vld [vmem:[%s1 + $0x220] sm:$0xff]
  %v161 = vld [vmem:[%s1 + $0x228] sm:$0xff]
  %v162 = vld [vmem:[%s1 + $0x230] sm:$0xff]
  %v163 = vld [vmem:[%s1 + $0x238] sm:$0xff]
  %v164 = vld [vmem:[%s1 + $0x240] sm:$0xff]
  %v165 = vld [vmem:[%s1 + $0x248] sm:$0xff]
  %v166 = vld [vmem:[%s1 + $0x250] sm:$0xff]
  %v167 = vld [vmem:[%s1 + $0x258] sm:$0xff]
  %v168 = vld [vmem:[%s1 + $0x260] sm:$0xff]
  %v169 = vld [vmem:[%s1 + $0x268] sm:$0xff]
  %v170 = vld [vmem:[%s1 + $0x270] sm:$0xff]
  %v171 = vld [vmem:[%s1 + $0x278] sm:$0xff]
  %v172 = vld [vmem:[%s1 + $0x280] sm:$0xff]
  %v173 = vld [vmem:[%s1 + $0x288] sm:$0xff]
  %v174 = vld [vmem:[%s1 + $0x290] sm:$0xff]
  %v175 = vld [vmem:[%s1 + $0x298] sm:$0xff]
  %v176 = vld [vmem:[%s1 + $0x2a0] sm:$0xff]
  %v177 = vld [vmem:[%s1 + $0x2a8] sm:$0xff]
  %v178 = vld [vmem:[%s1 + $0x2b0] sm:$0xff]
  %v179 = vld [vmem:[%s1 + $0x2b8] sm:$0xff]
  %v180 = vld [vmem:[%s1 + $0x2c0] sm:$0xff]
  %v181 = vld [vmem:[%s1 + $0x2c8] sm:$0xff]
  %v182 = vld [vmem:[%s1 + $0x2d0] sm:$0xff]
  %v183 = vld [vmem:[%s1 + $0x2d8] sm:$0xff]
  %v184 = vld [vmem:[%s1 + $0x2e0] sm:$0xff]
  %v185 = vld [vmem:[%s1 + $0x2e8] sm:$0xff]
  %v186 = vld [vmem:[%s1 + $0x2f0] sm:$0xff]
  %v187 = vld [vmem:[%s1 + $0x2f8] sm:$0xff]
  %v188 = vld [vmem:[%s1 + $0x300] sm:$0xff]
  %v189 = vld [vmem:[%s1 + $0x308] sm:$0xff]
  %v190 = vld [vmem:[%s1 + $0x310] sm:$0xff]
  %v191 = vld [vmem:[%s1 + $0x318] sm:$0xff]
  %v192 = vld [vmem:[%s1 + $0x320] sm:$0xff]
  %v193 = vld [vmem:[%s1 + $0x328] sm:$0xff]
  %v194 = vld [vmem:[%s1 + $0x330] sm:$0xff]
  %v195 = vld [vmem:[%s1 + $0x338] sm:$0xff]
  %v196 = vld [vmem:[%s1 + $0x340] sm:$0xff]
  %v197 = vld [vmem:[%s1 + $0x348] sm:$0xff]
  %v198 = vld [vmem:[%s1 + $0x350] sm:$0xff]
  %v199 = vld [vmem:[%s1 + $0x358] sm:$0xff]
  %v200 = vld [vmem:[%s1 + $0x360] sm:$0xff]
  %v201 = vld [vmem:[%s1 + $0x368] sm:$0xff]
  %v202 = vld [vmem:[%s1 + $0x370] sm:$0xff]
  %v203 = vld [vmem:[%s1 + $0x378] sm:$0xff]
  %v204 = vld [vmem:[%s1 + $0x380] sm:$0xff]
  %v205 = vld [vmem:[%s1 + $0x388] sm:$0xff]
  %v206 = vld [vmem:[%s1 + $0x390] sm:$0xff]
  %v207 = vld [vmem:[%s1 + $0x398] sm:$0xff]
  %v208 = vld [vmem:[%s1 + $0x3a0] sm:$0xff]
  %v209 = vld [vmem:[%s1 + $0x3a8] sm:$0xff]
  %v210 = vld [vmem:[%s1 + $0x3b0] sm:$0xff]
  %v211 = vld [vmem:[%s1 + $0x3b8] sm:$0xff]
  %v212 = vld [vmem:[%s1 + $0x3c0] sm:$0xff]
  %v213 = vld [vmem:[%s1 + $0x3c8] sm:$0xff]
  %v214 = vld [vmem:[%s1 + $0x3d0] sm:$0xff]
  %v215 = vld [vmem:[%s1 + $0x3d8] sm:$0xff]
  %v216 = vld [vmem:[%s1 + $0x3e0] sm:$0xff]
  %v217 = vld [vmem:[%s1 + $0x3e8] sm:$0xff]
  %v218 = vld [vmem:[%s1 + $0x3f0] sm:$0xff]
  %v219 = vld [vmem:[%s1 + $0x3f8] sm:$0xff]
  %220 = vmatprep.subr.mxu0 %v93
  %221 = vmatpush1.msra.mxu0 %v92
  %222 = vmatprep.subr.mxu0 %v101
  %223 = vmatpush1.msra.mxu0 %v100
  %224 = vmatprep.subr.mxu0 %v109
  %225 = vmatpush1.msra.mxu0 %v108
  %226 = vmatprep.subr.mxu0 %v117
  %227 = vmatpush1.msra.mxu0 %v116
  %228 = vmatprep.subr.mxu0 %v125
  %229 = vmatpush1.msra.mxu0 %v124
  %230 = vmatprep.subr.mxu0 %v133
  %231 = vmatpush1.msra.mxu0 %v132
  %232 = vmatprep.subr.mxu0 %v141
  %233 = vmatpush1.msra.mxu0 %v140
  %234 = vmatprep.subr.mxu0 %v149
  %235 = vmatpush1.msra.mxu0 %v148
  %236 = vmatprep.subr.mxu0 %v157
  %237 = vmatpush1.msra.mxu0 %v156
  %238 = vmatprep.subr.mxu0 %v165
  %239 = vmatpush1.msra.mxu0 %v164
  %240 = vmatprep.subr.mxu0 %v173
  %241 = vmatpush1.msra.mxu0 %v172
  %242 = vmatprep.subr.mxu0 %v181
  %243 = vmatpush1.msra.mxu0 %v180
  %244 = vmatprep.subr.mxu0 %v189
  %245 = vmatpush1.msra.mxu0 %v188
  %246 = vmatprep.subr.mxu0 %v197
  %247 = vmatpush1.msra.mxu0 %v196
  %248 = vmatprep.subr.mxu0 %v205
  %249 = vmatpush1.msra.mxu0 %v204
  %250 = vmatprep.subr.mxu0 %v213
  %251 = vmatpush1.msra.mxu0 %v212
  %252 = vmatprep.subr.mxu0 0.0
  %253 = vmatpush1.msra.mxu0 0.0
  %254 = vmatprep.subr.mxu0 0.0
  %255 = vmatpush1.msra.mxu0 0.0
  %256 = vmatprep.subr.mxu0 0.0
  %257 = vmatpush1.msra.mxu0 0.0
  %258 = vmatprep.subr.mxu0 0.0
  %259 = vmatpush1.msra.mxu0 0.0
  %260 = vmatprep.subr.mxu0 0.0
  %261 = vmatpush1.msra.mxu0 0.0
  %262 = vmatprep.subr.mxu0 0.0
  %263 = vmatpush1.msra.mxu0 0.0
  %264 = vmatprep.subr.mxu0 0.0
  %265 = vmatpush1.msra.mxu0 0.0
  %266 = vmatprep.subr.mxu0 0.0
  %267 = vmatpush1.msra.mxu0 0.0
  %268 = vmatprep.subr.mxu0 0.0
  %269 = vmatpush1.msra.mxu0 0.0
  %270 = vmatprep.subr.mxu0 0.0
  %271 = vmatpush1.msra.mxu0 0.0
  %272 = vmatprep.subr.mxu0 0.0
  %273 = vmatpush1.msra.mxu0 0.0
  %274 = vmatprep.subr.mxu0 0.0
  %275 = vmatpush1.msra.mxu0 0.0
  %276 = vmatprep.subr.mxu0 0.0
  %277 = vmatpush1.msra.mxu0 0.0
  %278 = vmatprep.subr.mxu0 0.0
  %279 = vmatpush1.msra.mxu0 0.0
  %280 = vmatprep.subr.mxu0 0.0
  %281 = vmatpush1.msra.mxu0 0.0
  %282 = vmatprep.subr.mxu0 0.0
  %283 = vmatpush1.msra.mxu0 0.0
  %284 = vmatprep.mubr.f32.mxu0 0.0
  %285 = vmatmul.mubr.f32.gmra.mrb[0].mxu0 %v88
  %v286 = vpop.f32.mrb[0].mxu0
  %v287 = vadd.f32 0.0, %v286
  %v288 = vpop.f32.mrb[0].mxu0
  %v289 = vadd.f32 0.0, %v288
  %290 = vmatprep.mubr.f32.mxu0 0.0
  %291 = vmatmul.mubr.f32.gmra.mrb[0].mxu0 %v89
  %v292 = vpop.f32.mrb[0].mxu0
  %v293 = vadd.f32 0.0, %v292
  %v294 = vpop.f32.mrb[0].mxu0
  %v295 = vadd.f32 0.0, %v294
  %296 = vmatprep.mubr.f32.mxu0 0.0
  %297 = vmatmul.mubr.f32.gmra.mrb[0].mxu0 %v90
  %v298 = vpop.f32.mrb[0].mxu0
  %v299 = vadd.f32 0.0, %v298
  %v300 = vpop.f32.mrb[0].mxu0
  %v301 = vadd.f32 0.0, %v300
  %302 = vmatprep.mubr.f32.mxu0 0.0
  %303 = vmatmul.mubr.f32.gmra.mrb[0].mxu0 %v91
  %v304 = vpop.f32.mrb[0].mxu0
  %v305 = vadd.f32 0.0, %v304
  %v306 = vpop.f32.mrb[0].mxu0
  %v307 = vadd.f32 0.0, %v306
  %308 = vdwg.mxu0
  %309 = vmatprep.subr.mxu0 %v95
  %310 = vmatpush1.msra.mxu0 %v94
  %311 = vmatprep.subr.mxu0 %v103
  %312 = vmatpush1.msra.mxu0 %v102
  %313 = vmatprep.subr.mxu0 %v111
  %314 = vmatpush1.msra.mxu0 %v110
  %315 = vmatprep.subr.mxu0 %v119
  %316 = vmatpush1.msra.mxu0 %v118
  %317 = vmatprep.subr.mxu0 %v127
  %318 = vmatpush1.msra.mxu0 %v126
  %319 = vmatprep.subr.mxu0 %v135
  %320 = vmatpush1.msra.mxu0 %v134
  %321 = vmatprep.subr.mxu0 %v143
  %322 = vmatpush1.msra.mxu0 %v142
  %323 = vmatprep.subr.mxu0 %v151
  %324 = vmatpush1.msra.mxu0 %v150
  %325 = vmatprep.subr.mxu0 %v159
  %326 = vmatpush1.msra.mxu0 %v158
  %327 = vmatprep.subr.mxu0 %v167
  %328 = vmatpush1.msra.mxu0 %v166
  %329 = vmatprep.subr.mxu0 %v175
  %330 = vmatpush1.msra.mxu0 %v174
  %331 = vmatprep.subr.mxu0 %v183
  %332 = vmatpush1.msra.mxu0 %v182
  %333 = vmatprep.subr.mxu0 %v191
  %334 = vmatpush1.msra.mxu0 %v190
  %335 = vmatprep.subr.mxu0 %v199
  %336 = vmatpush1.msra.mxu0 %v198
  %337 = vmatprep.subr.mxu0 %v207
  %338 = vmatpush1.msra.mxu0 %v206
  %339 = vmatprep.subr.mxu0 %v215
  %340 = vmatpush1.msra.mxu0 %v214
  %341 = vmatprep.subr.mxu0 0.0
  %342 = vmatpush1.msra.mxu0 0.0
  %343 = vmatprep.subr.mxu0 0.0
  %344 = vmatpush1.msra.mxu0 0.0
  %345 = vmatprep.subr.mxu0 0.0
  %346 = vmatpush1.msra.mxu0 0.0
  %347 = vmatprep.subr.mxu0 0.0
  %348 = vmatpush1.msra.mxu0 0.0
  %349 = vmatprep.subr.mxu0 0.0
  %350 = vmatpush1.msra.mxu0 0.0
  %351 = vmatprep.subr.mxu0 0.0
  %352 = vmatpush1.msra.mxu0 0.0
  %353 = vmatprep.subr.mxu0 0.0
  %354 = vmatpush1.msra.mxu0 0.0
  %355 = vmatprep.subr.mxu0 0.0
  %356 = vmatpush1.msra.mxu0 0.0
  %357 = vmatprep.subr.mxu0 0.0
  %358 = vmatpush1.msra.mxu0 0.0
  %359 = vmatprep.subr.mxu0 0.0
  %360 = vmatpush1.msra.mxu0 0.0
  %361 = vmatprep.subr.mxu0 0.0
  %362 = vmatpush1.msra.mxu0 0.0
  %363 = vmatprep.subr.mxu0 0.0
  %364 = vmatpush1.msra.mxu0 0.0
  %365 = vmatprep.subr.mxu0 0.0
  %366 = vmatpush1.msra.mxu0 0.0
  %367 = vmatprep.subr.mxu0 0.0
  %368 = vmatpush1.msra.mxu0 0.0
  %369 = vmatprep.subr.mxu0 0.0
  %370 = vmatpush1.msra.mxu0 0.0
  %371 = vmatprep.subr.mxu0 0.0
  %372 = vmatpush1.msra.mxu0 0.0
  %373 = vmatprep.mubr.f32.mxu0 0.0
  %374 = vmatmul.mubr.f32.gmra.mrb[0].mxu0 %v88
  %v375 = vpop.f32.mrb[0].mxu0
  %v376 = vadd.f32 0.0, %v375
  %v377 = vpop.f32.mrb[0].mxu0
  %v378 = vadd.f32 0.0, %v377
  %379 = vmatprep.mubr.f32.mxu0 0.0
  %380 = vmatmul.mubr.f32.gmra.mrb[0].mxu0 %v89
  %v381 = vpop.f32.mrb[0].mxu0
  %v382 = vadd.f32 0.0, %v381
  %v383 = vpop.f32.mrb[0].mxu0
  %v384 = vadd.f32 0.0, %v383
  %385 = vmatprep.mubr.f32.mxu0 0.0
  %386 = vmatmul.mubr.f32.gmra.mrb[0].mxu0 %v90
  %v387 = vpop.f32.mrb[0].mxu0
  %v388 = vadd.f32 0.0, %v387
  %v389 = vpop.f32.mrb[0].mxu0
  %v390 = vadd.f32 0.0, %v389
  %391 = vmatprep.mubr.f32.mxu0 0.0
  %392 = vmatmul.mubr.f32.gmra.mrb[0].mxu0 %v91
  %v393 = vpop.f32.mrb[0].mxu0
  %v394 = vadd.f32 0.0, %v393
  %v395 = vpop.f32.mrb[0].mxu0
  %v396 = vadd.f32 0.0, %v395
  %397 = vdwg.mxu0
  %398 = vmatprep.subr.mxu0 %v97
  %399 = vmatpush1.msra.mxu0 %v96
  %400 = vmatprep.subr.mxu0 %v105
  %401 = vmatpush1.msra.mxu0 %v104
  %402 = vmatprep.subr.mxu0 %v113
  %403 = vmatpush1.msra.mxu0 %v112
  %404 = vmatprep.subr.mxu0 %v121
  %405 = vmatpush1.msra.mxu0 %v120
  %406 = vmatprep.subr.mxu0 %v129
  %407 = vmatpush1.msra.mxu0 %v128
  %408 = vmatprep.subr.mxu0 %v137
  %409 = vmatpush1.msra.mxu0 %v136
  %410 = vmatprep.subr.mxu0 %v145
  %411 = vmatpush1.msra.mxu0 %v144
  %412 = vmatprep.subr.mxu0 %v153
  %413 = vmatpush1.msra.mxu0 %v152
  %414 = vmatprep.subr.mxu0 %v161
  %415 = vmatpush1.msra.mxu0 %v160
  %416 = vmatprep.subr.mxu0 %v169
  %417 = vmatpush1.msra.mxu0 %v168
  %418 = vmatprep.subr.mxu0 %v177
  %419 = vmatpush1.msra.mxu0 %v176
  %420 = vmatprep.subr.mxu0 %v185
  %421 = vmatpush1.msra.mxu0 %v184
  %422 = vmatprep.subr.mxu0 %v193
  %423 = vmatpush1.msra.mxu0 %v192
  %424 = vmatprep.subr.mxu0 %v201
  %425 = vmatpush1.msra.mxu0 %v200
  %426 = vmatprep.subr.mxu0 %v209
  %427 = vmatpush1.msra.mxu0 %v208
  %428 = vmatprep.subr.mxu0 %v217
  %429 = vmatpush1.msra.mxu0 %v216
  %430 = vmatprep.subr.mxu0 0.0
  %431 = vmatpush1.msra.mxu0 0.0
  %432 = vmatprep.subr.mxu0 0.0
  %433 = vmatpush1.msra.mxu0 0.0
  %434 = vmatprep.subr.mxu0 0.0
  %435 = vmatpush1.msra.mxu0 0.0
  %436 = vmatprep.subr.mxu0 0.0
  %437 = vmatpush1.msra.mxu0 0.0
  %438 = vmatprep.subr.mxu0 0.0
  %439 = vmatpush1.msra.mxu0 0.0
  %440 = vmatprep.subr.mxu0 0.0
  %441 = vmatpush1.msra.mxu0 0.0
  %442 = vmatprep.subr.mxu0 0.0
  %443 = vmatpush1.msra.mxu0 0.0
  %444 = vmatprep.subr.mxu0 0.0
  %445 = vmatpush1.msra.mxu0 0.0
  %446 = vmatprep.subr.mxu0 0.0
  %447 = vmatpush1.msra.mxu0 0.0
  %448 = vmatprep.subr.mxu0 0.0
  %449 = vmatpush1.msra.mxu0 0.0
  %450 = vmatprep.subr.mxu0 0.0
  %451 = vmatpush1.msra.mxu0 0.0
  %452 = vmatprep.subr.mxu0 0.0
  %453 = vmatpush1.msra.mxu0 0.0
  %454 = vmatprep.subr.mxu0 0.0
  %455 = vmatpush1.msra.mxu0 0.0
  %456 = vmatprep.subr.mxu0 0.0
  %457 = vmatpush1.msra.mxu0 0.0
  %458 = vmatprep.subr.mxu0 0.0
  %459 = vmatpush1.msra.mxu0 0.0
  %460 = vmatprep.subr.mxu0 0.0
  %461 = vmatpush1.msra.mxu0 0.0
  %462 = vmatprep.mubr.f32.mxu0 0.0
  %463 = vmatmul.mubr.f32.gmra.mrb[0].mxu0 %v88
  %v464 = vpop.f32.mrb[0].mxu0
  %v465 = vadd.f32 0.0, %v464
  %v466 = vpop.f32.mrb[0].mxu0
  %v467 = vadd.f32 0.0, %v466
  %468 = vmatprep.mubr.f32.mxu0 0.0
  %469 = vmatmul.mubr.f32.gmra.mrb[0].mxu0 %v89
  %v470 = vpop.f32.mrb[0].mxu0
  %v471 = vadd.f32 0.0, %v470
  %v472 = vpop.f32.mrb[0].mxu0
  %v473 = vadd.f32 0.0, %v472
  %474 = vmatprep.mubr.f32.mxu0 0.0
  %475 = vmatmul.mubr.f32.gmra.mrb[0].mxu0 %v90
  %v476 = vpop.f32.mrb[0].mxu0
  %v477 = vadd.f32 0.0, %v476
  %v478 = vpop.f32.mrb[0].mxu0
  %v479 = vadd.f32 0.0, %v478
  %480 = vmatprep.mubr.f32.mxu0 0.0
  %481 = vmatmul.mubr.f32.gmra.mrb[0].mxu0 %v91
  %v482 = vpop.f32.mrb[0].mxu0
  %v483 = vadd.f32 0.0, %v482
  %v484 = vpop.f32.mrb[0].mxu0
  %v485 = vadd.f32 0.0, %v484
  %486 = vdwg.mxu0
  %487 = vmatprep.subr.mxu0 %v99
  %488 = vmatpush1.msra.mxu0 %v98
  %489 = vmatprep.subr.mxu0 %v107
  %490 = vmatpush1.msra.mxu0 %v106
  %491 = vmatprep.subr.mxu0 %v115
  %492 = vmatpush1.msra.mxu0 %v114
  %493 = vmatprep.subr.mxu0 %v123
  %494 = vmatpush1.msra.mxu0 %v122
  %495 = vmatprep.subr.mxu0 %v131
  %496 = vmatpush1.msra.mxu0 %v130
  %497 = vmatprep.subr.mxu0 %v139
  %498 = vmatpush1.msra.mxu0 %v138
  %499 = vmatprep.subr.mxu0 %v147
  %500 = vmatpush1.msra.mxu0 %v146
  %501 = vmatprep.subr.mxu0 %v155
  %502 = vmatpush1.msra.mxu0 %v154
  %503 = vmatprep.subr.mxu0 %v163
  %504 = vmatpush1.msra.mxu0 %v162
  %505 = vmatprep.subr.mxu0 %v171
  %506 = vmatpush1.msra.mxu0 %v170
  %507 = vmatprep.subr.mxu0 %v179
  %508 = vmatpush1.msra.mxu0 %v178
  %509 = vmatprep.subr.mxu0 %v187
  %510 = vmatpush1.msra.mxu0 %v186
  %511 = vmatprep.subr.mxu0 %v195
  %512 = vmatpush1.msra.mxu0 %v194
  %513 = vmatprep.subr.mxu0 %v203
  %514 = vmatpush1.msra.mxu0 %v202
  %515 = vmatprep.subr.mxu0 %v211
  %516 = vmatpush1.msra.mxu0 %v210
  %517 = vmatprep.subr.mxu0 %v219
  %518 = vmatpush1.msra.mxu0 %v218
  %519 = vmatprep.subr.mxu0 0.0
  %520 = vmatpush1.msra.mxu0 0.0
  %521 = vmatprep.subr.mxu0 0.0
  %522 = vmatpush1.msra.mxu0 0.0
  %523 = vmatprep.subr.mxu0 0.0
  %524 = vmatpush1.msra.mxu0 0.0
  %525 = vmatprep.subr.mxu0 0.0
  %526 = vmatpush1.msra.mxu0 0.0
  %527 = vmatprep.subr.mxu0 0.0
  %528 = vmatpush1.msra.mxu0 0.0
  %529 = vmatprep.subr.mxu0 0.0
  %530 = vmatpush1.msra.mxu0 0.0
  %531 = vmatprep.subr.mxu0 0.0
  %532 = vmatpush1.msra.mxu0 0.0
  %533 = vmatprep.subr.mxu0 0.0
  %534 = vmatpush1.msra.mxu0 0.0
  %535 = vmatprep.subr.mxu0 0.0
  %536 = vmatpush1.msra.mxu0 0.0
  %537 = vmatprep.subr.mxu0 0.0
  %538 = vmatpush1.msra.mxu0 0.0
  %539 = vmatprep.subr.mxu0 0.0
  %540 = vmatpush1.msra.mxu0 0.0
  %541 = vmatprep.subr.mxu0 0.0
  %542 = vmatpush1.msra.mxu0 0.0
  %543 = vmatprep.subr.mxu0 0.0
  %544 = vmatpush1.msra.mxu0 0.0
  %545 = vmatprep.subr.mxu0 0.0
  %546 = vmatpush1.msra.mxu0 0.0
  %547 = vmatprep.subr.mxu0 0.0
  %548 = vmatpush1.msra.mxu0 0.0
  %549 = vmatprep.subr.mxu0 0.0
  %550 = vmatpush1.msra.mxu0 0.0
  %551 = vmatprep.mubr.f32.mxu0 0.0
  %552 = vmatmul.mubr.f32.gmra.mrb[0].mxu0 %v88
  %v553 = vpop.f32.mrb[0].mxu0
  %v554 = vadd.f32 0.0, %v553
  %v555 = vpop.f32.mrb[0].mxu0
  %v556 = vadd.f32 0.0, %v555
  %557 = vmatprep.mubr.f32.mxu0 0.0
  %558 = vmatmul.mubr.f32.gmra.mrb[0].mxu0 %v89
  %v559 = vpop.f32.mrb[0].mxu0
  %v560 = vadd.f32 0.0, %v559
  %v561 = vpop.f32.mrb[0].mxu0
  %v562 = vadd.f32 0.0, %v561
  %563 = vmatprep.mubr.f32.mxu0 0.0
  %564 = vmatmul.mubr.f32.gmra.mrb[0].mxu0 %v90
  %v565 = vpop.f32.mrb[0].mxu0
  %v566 = vadd.f32 0.0, %v565
  %v567 = vpop.f32.mrb[0].mxu0
  %v568 = vadd.f32 0.0, %v567
  %569 = vmatprep.mubr.f32.mxu0 0.0
  %570 = vmatmul.mubr.f32.gmra.mrb[0].mxu0 %v91
  %v571 = vpop.f32.mrb[0].mxu0
  %v572 = vadd.f32 0.0, %v571
  %v573 = vpop.f32.mrb[0].mxu0
  %v574 = vadd.f32 0.0, %v573
  %575 = vdwg.mxu0
  %v576 = vadd.f32 %v56, %v287
  %v577 = vadd.f32 %v57, %v289
  %v578 = vadd.f32 %v58, %v376
  %v579 = vadd.f32 %v59, %v378
  %v580 = vadd.f32 %v60, %v465
  %v581 = vadd.f32 %v61, %v467
  %v582 = vadd.f32 %v62, %v554
  %v583 = vadd.f32 %v63, %v556
  %v584 = vadd.f32 %v64, %v293
  %v585 = vadd.f32 %v65, %v295
  %v586 = vadd.f32 %v66, %v382
  %v587 = vadd.f32 %v67, %v384
  %v588 = vadd.f32 %v68, %v471
  %v589 = vadd.f32 %v69, %v473
  %v590 = vadd.f32 %v70, %v560
  %v591 = vadd.f32 %v71, %v562
  %v592 = vadd.f32 %v72, %v299
  %v593 = vadd.f32 %v73, %v301
  %v594 = vadd.f32 %v74, %v388
  %v595 = vadd.f32 %v75, %v390
  %v596 = vadd.f32 %v76, %v477
  %v597 = vadd.f32 %v77, %v479
  %v598 = vadd.f32 %v78, %v566
  %v599 = vadd.f32 %v79, %v568
  %v600 = vadd.f32 %v80, %v305
  %v601 = vadd.f32 %v81, %v307
  %v602 = vadd.f32 %v82, %v394
  %v603 = vadd.f32 %v83, %v396
  %v604 = vadd.f32 %v84, %v483
  %v605 = vadd.f32 %v85, %v485
  %v606 = vadd.f32 %v86, %v572
  %v607 = vadd.f32 %v87, %v574
  %608 = vst [vmem:[#allocation2] sm:$0xff] %v576
  %609 = vst [vmem:[#allocation2 + $0x8] sm:$0xff] %v577
  %610 = vst [vmem:[#allocation2 + $0x10] sm:$0xff] %v578
  %611 = vst [vmem:[#allocation2 + $0x18] sm:$0xff] %v579
  %612 = vst [vmem:[#allocation2 + $0x20] sm:$0xff] %v580
  %613 = vst [vmem:[#allocation2 + $0x28] sm:$0xff] %v581
  %614 = vst [vmem:[#allocation2 + $0x30] sm:$0xff] %v582
  %615 = vst [vmem:[#allocation2 + $0x38] sm:$0xff] %v583
  %616 = vst [vmem:[#allocation2 + $0x40] sm:$0xff] %v584
  %617 = vst [vmem:[#allocation2 + $0x48] sm:$0xff] %v585
  %618 = vst [vmem:[#allocation2 + $0x50] sm:$0xff] %v586
  %619 = vst [vmem:[#allocation2 + $0x58] sm:$0xff] %v587
  %620 = vst [vmem:[#allocation2 + $0x60] sm:$0xff] %v588
  %621 = vst [vmem:[#allocation2 + $0x68] sm:$0xff] %v589
  %622 = vst [vmem:[#allocation2 + $0x70] sm:$0xff] %v590
  %623 = vst [vmem:[#allocation2 + $0x78] sm:$0xff] %v591
  %624 = vst [vmem:[#allocation2 + $0x80] sm:$0xff] %v592
  %625 = vst [vmem:[#allocation2 + $0x88] sm:$0xff] %v593
  %626 = vst [vmem:[#allocation2 + $0x90] sm:$0xff] %v594
  %627 = vst [vmem:[#allocation2 + $0x98] sm:$0xff] %v595
  %628 = vst [vmem:[#allocation2 + $0xa0] sm:$0xff] %v596
  %629 = vst [vmem:[#allocation2 + $0xa8] sm:$0xff] %v597
  %630 = vst [vmem:[#allocation2 + $0xb0] sm:$0xff] %v598
  %631 = vst [vmem:[#allocation2 + $0xb8] sm:$0xff] %v599
  %632 = vst [vmem:[#allocation2 + $0xc0] sm:$0xff] %v600
  %633 = vst [vmem:[#allocation2 + $0xc8] sm:$0xff] %v601
  %634 = vst [vmem:[#allocation2 + $0xd0] sm:$0xff] %v602
  %635 = vst [vmem:[#allocation2 + $0xd8] sm:$0xff] %v603
  %636 = vst [vmem:[#allocation2 + $0xe0] sm:$0xff] %v604
  %637 = vst [vmem:[#allocation2 + $0xe8] sm:$0xff] %v605
  %638 = vst [vmem:[#allocation2 + $0xf0] sm:$0xff] %v606
  %639 = vst [vmem:[#allocation2 + $0xf8] sm:$0xff] %v607
  // Predicated region
  $region26: #{pupil_model_forward.1} parent=0 // pred_check
    %p640 = pneg %p20
  $region27: #{pupil_model_forward.1} parent=0 // pred_check_branch
    %642 = sbr.rel (%p640) target = $region29
  $region28: #{pupil_model_forward.1} parent=0 // pred_region
    %v643 = vld [vmem:[#allocation2] sm:$0xff]
    %v644 = vld [vmem:[#allocation2 + $0x8] sm:$0xff]
    %v645 = vld [vmem:[#allocation2 + $0x10] sm:$0xff]
    %v646 = vld [vmem:[#allocation2 + $0x18] sm:$0xff]
    %v647 = vld [vmem:[#allocation2 + $0x20] sm:$0xff]
    %v648 = vld [vmem:[#allocation2 + $0x28] sm:$0xff]
    %v649 = vld [vmem:[#allocation2 + $0x30] sm:$0xff]
    %v650 = vld [vmem:[#allocation2 + $0x38] sm:$0xff]
    %v651 = vld [vmem:[#allocation2 + $0x40] sm:$0xff]
    %v652 = vld [vmem:[#allocation2 + $0x48] sm:$0xff]
    %v653 = vld [vmem:[#allocation2 + $0x50] sm:$0xff]
    %v654 = vld [vmem:[#allocation2 + $0x58] sm:$0xff]
    %v655 = vld [vmem:[#allocation2 + $0x60] sm:$0xff]
    %v656 = vld [vmem:[#allocation2 + $0x68] sm:$0xff]
    %v657 = vld [vmem:[#allocation2 + $0x70] sm:$0xff]
    %v658 = vld [vmem:[#allocation2 + $0x78] sm:$0xff]
    %v659 = vld [vmem:[#allocation2 + $0x80] sm:$0xff]
    %v660 = vld [vmem:[#allocation2 + $0x88] sm:$0xff]
    %v661 = vld [vmem:[#allocation2 + $0x90] sm:$0xff]
    %v662 = vld [vmem:[#allocation2 + $0x98] sm:$0xff]
    %v663 = vld [vmem:[#allocation2 + $0xa0] sm:$0xff]
    %v664 = vld [vmem:[#allocation2 + $0xa8] sm:$0xff]
    %v665 = vld [vmem:[#allocation2 + $0xb0] sm:$0xff]
    %v666 = vld [vmem:[#allocation2 + $0xb8] sm:$0xff]
    %v667 = vld [vmem:[#allocation2 + $0xc0] sm:$0xff]
    %v668 = vld [vmem:[#allocation2 + $0xc8] sm:$0xff]
    %v669 = vld [vmem:[#allocation2 + $0xd0] sm:$0xff]
    %v670 = vld [vmem:[#allocation2 + $0xd8] sm:$0xff]
    %v671 = vld [vmem:[#allocation2 + $0xe0] sm:$0xff]
    %v672 = vld [vmem:[#allocation2 + $0xe8] sm:$0xff]
    %v673 = vld [vmem:[#allocation2 + $0xf0] sm:$0xff]
    %v674 = vld [vmem:[#allocation2 + $0xf8] sm:$0xff]
    %v675 = vld [vmem:[%s2] sm:$0xff]
    %v677 = vlaneseq
    %v678 = vshrl.u32 %v677, 7
    %v679 = vsub.s32 0, %v678
    %v680 = vrot.slane %v675, %v679
    %v681 = vlaneseq
    %v682 = vshrl.u32 %v681, 7
    %v683 = vsub.s32 1, %v682
    %v684 = vrot.slane %v675, %v683
    %v685 = vlaneseq
    %v686 = vshrl.u32 %v685, 7
    %v687 = vsub.s32 2, %v686
    %v688 = vrot.slane %v675, %v687
    %v689 = vlaneseq
    %v690 = vshrl.u32 %v689, 7
    %v691 = vsub.s32 3, %v690
    %v692 = vrot.slane %v675, %v691
    %v693 = vlaneseq
    %v694 = vshrl.u32 %v693, 7
    %v695 = vsub.s32 4, %v694
    %v696 = vrot.slane %v675, %v695
    %v697 = vlaneseq
    %v698 = vshrl.u32 %v697, 7
    %v699 = vsub.s32 5, %v698
    %v700 = vrot.slane %v675, %v699
    %v701 = vlaneseq
    %v702 = vshrl.u32 %v701, 7
    %v703 = vsub.s32 6, %v702
    %v704 = vrot.slane %v675, %v703
    %v705 = vlaneseq
    %v706 = vshrl.u32 %v705, 7
    %v707 = vsub.s32 7, %v706
    %v708 = vrot.slane %v675, %v707
    %v717 = vadd.f32 %v643, %v680
    %v718 = vadd.f32 %v644, %v684
    %v719 = vadd.f32 %v645, %v688
    %v720 = vadd.f32 %v646, %v692
    %v721 = vadd.f32 %v647, %v696
    %v722 = vadd.f32 %v648, %v700
    %v723 = vadd.f32 %v649, %v704
    %v724 = vadd.f32 %v650, %v708
    %v725 = vadd.f32 %v651, %v680
    %v726 = vadd.f32 %v652, %v684
    %v727 = vadd.f32 %v653, %v688
    %v728 = vadd.f32 %v654, %v692
    %v729 = vadd.f32 %v655, %v696
    %v730 = vadd.f32 %v656, %v700
    %v731 = vadd.f32 %v657, %v704
    %v732 = vadd.f32 %v658, %v708
    %v733 = vadd.f32 %v659, %v680
    %v734 = vadd.f32 %v660, %v684
    %v735 = vadd.f32 %v661, %v688
    %v736 = vadd.f32 %v662, %v692
    %v737 = vadd.f32 %v663, %v696
    %v738 = vadd.f32 %v664, %v700
    %v739 = vadd.f32 %v665, %v704
    %v740 = vadd.f32 %v666, %v708
    %v741 = vadd.f32 %v667, %v680
    %v742 = vadd.f32 %v668, %v684
    %v743 = vadd.f32 %v669, %v688
    %v744 = vadd.f32 %v670, %v692
    %v745 = vadd.f32 %v671, %v696
    %v746 = vadd.f32 %v672, %v700
    %v747 = vadd.f32 %v673, %v704
    %v748 = vadd.f32 %v674, %v708
    %v749 = vmax.f32 %v717, 0.0
    %v750 = vmax.f32 %v718, 0.0
    %v751 = vmax.f32 %v719, 0.0
    %v752 = vmax.f32 %v720, 0.0
    %v753 = vmax.f32 %v721, 0.0
    %v754 = vmax.f32 %v722, 0.0
    %v755 = vmax.f32 %v723, 0.0
    %v756 = vmax.f32 %v724, 0.0
    %v757 = vmax.f32 %v725, 0.0
    %v758 = vmax.f32 %v726, 0.0
    %v759 = vmax.f32 %v727, 0.0
    %v760 = vmax.f32 %v728, 0.0
    %v761 = vmax.f32 %v729, 0.0
    %v762 = vmax.f32 %v730, 0.0
    %v763 = vmax.f32 %v731, 0.0
    %v764 = vmax.f32 %v732, 0.0
    %v765 = vmax.f32 %v733, 0.0
    %v766 = vmax.f32 %v734, 0.0
    %v767 = vmax.f32 %v735, 0.0
    %v768 = vmax.f32 %v736, 0.0
    %v769 = vmax.f32 %v737, 0.0
    %v770 = vmax.f32 %v738, 0.0
    %v771 = vmax.f32 %v739, 0.0
    %v772 = vmax.f32 %v740, 0.0
    %v773 = vmax.f32 %v741, 0.0
    %v774 = vmax.f32 %v742, 0.0
    %v775 = vmax.f32 %v743, 0.0
    %v776 = vmax.f32 %v744, 0.0
    %v777 = vmax.f32 %v745, 0.0
    %v778 = vmax.f32 %v746, 0.0
    %v779 = vmax.f32 %v747, 0.0
    %v780 = vmax.f32 %v748, 0.0
    %v781 = vld [vmem:[%s3] sm:$0xff]
    %v782 = vld [vmem:[%s3 + $0x8] sm:$0xff]
    %v783 = vld [vmem:[%s3 + $0x10] sm:$0xff]
    %v784 = vld [vmem:[%s3 + $0x18] sm:$0xff]
    %v785 = vld [vmem:[%s3 + $0x20] sm:$0xff]
    %v786 = vld [vmem:[%s3 + $0x28] sm:$0xff]
    %v787 = vld [vmem:[%s3 + $0x30] sm:$0xff]
    %v788 = vld [vmem:[%s3 + $0x38] sm:$0xff]
    %v789 = vld [vmem:[%s3 + $0x40] sm:$0xff]
    %v790 = vld [vmem:[%s3 + $0x48] sm:$0xff]
    %v791 = vld [vmem:[%s3 + $0x50] sm:$0xff]
    %v792 = vld [vmem:[%s3 + $0x58] sm:$0xff]
    %v793 = vld [vmem:[%s3 + $0x60] sm:$0xff]
    %v794 = vld [vmem:[%s3 + $0x68] sm:$0xff]
    %v795 = vld [vmem:[%s3 + $0x70] sm:$0xff]
    %v796 = vld [vmem:[%s3 + $0x78] sm:$0xff]
    %v797 = vld [vmem:[%s3 + $0x80] sm:$0xff]
    %v798 = vld [vmem:[%s3 + $0x88] sm:$0xff]
    %v799 = vld [vmem:[%s3 + $0x90] sm:$0xff]
    %v800 = vld [vmem:[%s3 + $0x98] sm:$0xff]
    %v801 = vld [vmem:[%s3 + $0xa0] sm:$0xff]
    %v802 = vld [vmem:[%s3 + $0xa8] sm:$0xff]
    %v803 = vld [vmem:[%s3 + $0xb0] sm:$0xff]
    %v804 = vld [vmem:[%s3 + $0xb8] sm:$0xff]
    %v805 = vld [vmem:[%s3 + $0xc0] sm:$0xff]
    %v806 = vld [vmem:[%s3 + $0xc8] sm:$0xff]
    %v807 = vld [vmem:[%s3 + $0xd0] sm:$0xff]
    %v808 = vld [vmem:[%s3 + $0xd8] sm:$0xff]
    %v809 = vld [vmem:[%s3 + $0xe0] sm:$0xff]
    %v810 = vld [vmem:[%s3 + $0xe8] sm:$0xff]
    %v811 = vld [vmem:[%s3 + $0xf0] sm:$0xff]
    %v812 = vld [vmem:[%s3 + $0xf8] sm:$0xff]
    %v813 = vld [vmem:[%s3 + $0x100] sm:$0xff]
    %v814 = vld [vmem:[%s3 + $0x108] sm:$0xff]
    %v815 = vld [vmem:[%s3 + $0x110] sm:$0xff]
    %v816 = vld [vmem:[%s3 + $0x118] sm:$0xff]
    %v817 = vld [vmem:[%s3 + $0x120] sm:$0xff]
    %v818 = vld [vmem:[%s3 + $0x128] sm:$0xff]
    %v819 = vld [vmem:[%s3 + $0x130] sm:$0xff]
    %v820 = vld [vmem:[%s3 + $0x138] sm:$0xff]
    %v821 = vld [vmem:[%s3 + $0x140] sm:$0xff]
    %v822 = vld [vmem:[%s3 + $0x148] sm:$0xff]
    %v823 = vld [vmem:[%s3 + $0x150] sm:$0xff]
    %v824 = vld [vmem:[%s3 + $0x158] sm:$0xff]
    %v825 = vld [vmem:[%s3 + $0x160] sm:$0xff]
    %v826 = vld [vmem:[%s3 + $0x168] sm:$0xff]
    %v827 = vld [vmem:[%s3 + $0x170] sm:$0xff]
    %v828 = vld [vmem:[%s3 + $0x178] sm:$0xff]
    %v829 = vld [vmem:[%s3 + $0x180] sm:$0xff]
    %v830 = vld [vmem:[%s3 + $0x188] sm:$0xff]
    %v831 = vld [vmem:[%s3 + $0x190] sm:$0xff]
    %v832 = vld [vmem:[%s3 + $0x198] sm:$0xff]
    %v833 = vld [vmem:[%s3 + $0x1a0] sm:$0xff]
    %v834 = vld [vmem:[%s3 + $0x1a8] sm:$0xff]
    %v835 = vld [vmem:[%s3 + $0x1b0] sm:$0xff]
    %v836 = vld [vmem:[%s3 + $0x1b8] sm:$0xff]
    %v837 = vld [vmem:[%s3 + $0x1c0] sm:$0xff]
    %v838 = vld [vmem:[%s3 + $0x1c8] sm:$0xff]
    %v839 = vld [vmem:[%s3 + $0x1d0] sm:$0xff]
    %v840 = vld [vmem:[%s3 + $0x1d8] sm:$0xff]
    %v841 = vld [vmem:[%s3 + $0x1e0] sm:$0xff]
    %v842 = vld [vmem:[%s3 + $0x1e8] sm:$0xff]
    %v843 = vld [vmem:[%s3 + $0x1f0] sm:$0xff]
    %v844 = vld [vmem:[%s3 + $0x1f8] sm:$0xff]
    %v845 = vld [vmem:[%s3 + $0x200] sm:$0xff]
    %v846 = vld [vmem:[%s3 + $0x208] sm:$0xff]
    %v847 = vld [vmem:[%s3 + $0x210] sm:$0xff]
    %v848 = vld [vmem:[%s3 + $0x218] sm:$0xff]
    %v849 = vld [vmem:[%s3 + $0x220] sm:$0xff]
    %v850 = vld [vmem:[%s3 + $0x228] sm:$0xff]
    %v851 = vld [vmem:[%s3 + $0x230] sm:$0xff]
    %v852 = vld [vmem:[%s3 + $0x238] sm:$0xff]
    %v853 = vld [vmem:[%s3 + $0x240] sm:$0xff]
    %v854 = vld [vmem:[%s3 + $0x248] sm:$0xff]
    %v855 = vld [vmem:[%s3 + $0x250] sm:$0xff]
    %v856 = vld [vmem:[%s3 + $0x258] sm:$0xff]
    %v857 = vld [vmem:[%s3 + $0x260] sm:$0xff]
    %v858 = vld [vmem:[%s3 + $0x268] sm:$0xff]
    %v859 = vld [vmem:[%s3 + $0x270] sm:$0xff]
    %v860 = vld [vmem:[%s3 + $0x278] sm:$0xff]
    %v861 = vld [vmem:[%s3 + $0x280] sm:$0xff]
    %v862 = vld [vmem:[%s3 + $0x288] sm:$0xff]
    %v863 = vld [vmem:[%s3 + $0x290] sm:$0xff]
    %v864 = vld [vmem:[%s3 + $0x298] sm:$0xff]
    %v865 = vld [vmem:[%s3 + $0x2a0] sm:$0xff]
    %v866 = vld [vmem:[%s3 + $0x2a8] sm:$0xff]
    %v867 = vld [vmem:[%s3 + $0x2b0] sm:$0xff]
    %v868 = vld [vmem:[%s3 + $0x2b8] sm:$0xff]
    %v869 = vld [vmem:[%s3 + $0x2c0] sm:$0xff]
    %v870 = vld [vmem:[%s3 + $0x2c8] sm:$0xff]
    %v871 = vld [vmem:[%s3 + $0x2d0] sm:$0xff]
    %v872 = vld [vmem:[%s3 + $0x2d8] sm:$0xff]
    %v873 = vld [vmem:[%s3 + $0x2e0] sm:$0xff]
    %v874 = vld [vmem:[%s3 + $0x2e8] sm:$0xff]
    %v875 = vld [vmem:[%s3 + $0x2f0] sm:$0xff]
    %v876 = vld [vmem:[%s3 + $0x2f8] sm:$0xff]
    %v877 = vld [vmem:[%s3 + $0x300] sm:$0xff]
    %v878 = vld [vmem:[%s3 + $0x308] sm:$0xff]
    %v879 = vld [vmem:[%s3 + $0x310] sm:$0xff]
    %v880 = vld [vmem:[%s3 + $0x318] sm:$0xff]
    %v881 = vld [vmem:[%s3 + $0x320] sm:$0xff]
    %v882 = vld [vmem:[%s3 + $0x328] sm:$0xff]
    %v883 = vld [vmem:[%s3 + $0x330] sm:$0xff]
    %v884 = vld [vmem:[%s3 + $0x338] sm:$0xff]
    %v885 = vld [vmem:[%s3 + $0x340] sm:$0xff]
    %v886 = vld [vmem:[%s3 + $0x348] sm:$0xff]
    %v887 = vld [vmem:[%s3 + $0x350] sm:$0xff]
    %v888 = vld [vmem:[%s3 + $0x358] sm:$0xff]
    %v889 = vld [vmem:[%s3 + $0x360] sm:$0xff]
    %v890 = vld [vmem:[%s3 + $0x368] sm:$0xff]
    %v891 = vld [vmem:[%s3 + $0x370] sm:$0xff]
    %v892 = vld [vmem:[%s3 + $0x378] sm:$0xff]
    %v893 = vld [vmem:[%s3 + $0x380] sm:$0xff]
    %v894 = vld [vmem:[%s3 + $0x388] sm:$0xff]
    %v895 = vld [vmem:[%s3 + $0x390] sm:$0xff]
    %v896 = vld [vmem:[%s3 + $0x398] sm:$0xff]
    %v897 = vld [vmem:[%s3 + $0x3a0] sm:$0xff]
    %v898 = vld [vmem:[%s3 + $0x3a8] sm:$0xff]
    %v899 = vld [vmem:[%s3 + $0x3b0] sm:$0xff]
    %v900 = vld [vmem:[%s3 + $0x3b8] sm:$0xff]
    %v901 = vld [vmem:[%s3 + $0x3c0] sm:$0xff]
    %v902 = vld [vmem:[%s3 + $0x3c8] sm:$0xff]
    %v903 = vld [vmem:[%s3 + $0x3d0] sm:$0xff]
    %v904 = vld [vmem:[%s3 + $0x3d8] sm:$0xff]
    %v905 = vld [vmem:[%s3 + $0x3e0] sm:$0xff]
    %v906 = vld [vmem:[%s3 + $0x3e8] sm:$0xff]
    %v907 = vld [vmem:[%s3 + $0x3f0] sm:$0xff]
    %v908 = vld [vmem:[%s3 + $0x3f8] sm:$0xff]
    %v909 = vld [vmem:[%s4] sm:$0x1]
    %v911 = vlaneseq
    %v912 = vshrl.u32 %v911, 7
    %v913 = vsub.s32 0, %v912
    %v914 = vrot.slane %v909, %v913
    %916 = vmatprep.subr.mxu0 0.0
    %917 = vmatpush1.msra.mxu0 %v781
    %918 = vmatprep.subr.mxu0 0.0
    %919 = vmatpush1.msra.mxu0 %v782
    %920 = vmatprep.subr.mxu0 0.0
    %921 = vmatpush1.msra.mxu0 %v783
    %922 = vmatprep.subr.mxu0 0.0
    %923 = vmatpush1.msra.mxu0 %v784
    %924 = vmatprep.subr.mxu0 0.0
    %925 = vmatpush1.msra.mxu0 %v785
    %926 = vmatprep.subr.mxu0 0.0
    %927 = vmatpush1.msra.mxu0 %v786
    %928 = vmatprep.subr.mxu0 0.0
    %929 = vmatpush1.msra.mxu0 %v787
    %930 = vmatprep.subr.mxu0 0.0
    %931 = vmatpush1.msra.mxu0 %v788
    %932 = vmatprep.subr.mxu0 0.0
    %933 = vmatpush1.msra.mxu0 %v789
    %934 = vmatprep.subr.mxu0 0.0
    %935 = vmatpush1.msra.mxu0 %v790
    %936 = vmatprep.subr.mxu0 0.0
    %937 = vmatpush1.msra.mxu0 %v791
    %938 = vmatprep.subr.mxu0 0.0
    %939 = vmatpush1.msra.mxu0 %v792
    %940 = vmatprep.subr.mxu0 0.0
    %941 = vmatpush1.msra.mxu0 %v793
    %942 = vmatprep.subr.mxu0 0.0
    %943 = vmatpush1.msra.mxu0 %v794
    %944 = vmatprep.subr.mxu0 0.0
    %945 = vmatpush1.msra.mxu0 %v795
    %946 = vmatprep.subr.mxu0 0.0
    %947 = vmatpush1.msra.mxu0 %v796
    %948 = vmatprep.subr.mxu0 0.0
    %949 = vmatpush1.msra.mxu0 %v797
    %950 = vmatprep.subr.mxu0 0.0
    %951 = vmatpush1.msra.mxu0 %v798
    %952 = vmatprep.subr.mxu0 0.0
    %953 = vmatpush1.msra.mxu0 %v799
    %954 = vmatprep.subr.mxu0 0.0
    %955 = vmatpush1.msra.mxu0 %v800
    %956 = vmatprep.subr.mxu0 0.0
    %957 = vmatpush1.msra.mxu0 %v801
    %958 = vmatprep.subr.mxu0 0.0
    %959 = vmatpush1.msra.mxu0 %v802
    %960 = vmatprep.subr.mxu0 0.0
    %961 = vmatpush1.msra.mxu0 %v803
    %962 = vmatprep.subr.mxu0 0.0
    %963 = vmatpush1.msra.mxu0 %v804
    %964 = vmatprep.subr.mxu0 0.0
    %965 = vmatpush1.msra.mxu0 %v805
    %966 = vmatprep.subr.mxu0 0.0
    %967 = vmatpush1.msra.mxu0 %v806
    %968 = vmatprep.subr.mxu0 0.0
    %969 = vmatpush1.msra.mxu0 %v807
    %970 = vmatprep.subr.mxu0 0.0
    %971 = vmatpush1.msra.mxu0 %v808
    %972 = vmatprep.subr.mxu0 0.0
    %973 = vmatpush1.msra.mxu0 %v809
    %974 = vmatprep.subr.mxu0 0.0
    %975 = vmatpush1.msra.mxu0 %v810
    %976 = vmatprep.subr.mxu0 0.0
    %977 = vmatpush1.msra.mxu0 %v811
    %978 = vmatprep.subr.mxu0 0.0
    %979 = vmatpush1.msra.mxu0 %v812
    %980 = vmatprep.mubr.f32.mxu0 %v750
    %981 = vmatmul.mubr.f32.gmra.mrb[0].mxu0 %v749
    %v982 = vpop.f32.mrb[0].mxu0
    %v983 = vadd.f32 %v914, %v982
    %v984 = vpop.f32.mrb[0].mxu0
    %985 = vmatprep.mubr.f32.mxu0 %v758
    %986 = vmatmul.mubr.f32.gmra.mrb[0].mxu0 %v757
    %v987 = vpop.f32.mrb[0].mxu0
    %v988 = vadd.f32 %v914, %v987
    %v989 = vpop.f32.mrb[0].mxu0
    %990 = vmatprep.mubr.f32.mxu0 %v766
    %991 = vmatmul.mubr.f32.gmra.mrb[0].mxu0 %v765
    %v992 = vpop.f32.mrb[0].mxu0
    %v993 = vadd.f32 %v914, %v992
    %v994 = vpop.f32.mrb[0].mxu0
    %995 = vmatprep.mubr.f32.mxu0 %v774
    %996 = vmatmul.mubr.f32.gmra.mrb[0].mxu0 %v773
    %v997 = vpop.f32.mrb[0].mxu0
    %v998 = vadd.f32 %v914, %v997
    %v999 = vpop.f32.mrb[0].mxu0
    %1000 = vdwg.mxu0
    %1001 = vmatprep.subr.mxu0 0.0
    %1002 = vmatpush1.msra.mxu0 %v813
    %1003 = vmatprep.subr.mxu0 0.0
    %1004 = vmatpush1.msra.mxu0 %v814
    %1005 = vmatprep.subr.mxu0 0.0
    %1006 = vmatpush1.msra.mxu0 %v815
    %1007 = vmatprep.subr.mxu0 0.0
    %1008 = vmatpush1.msra.mxu0 %v816
    %1009 = vmatprep.subr.mxu0 0.0
    %1010 = vmatpush1.msra.mxu0 %v817
    %1011 = vmatprep.subr.mxu0 0.0
    %1012 = vmatpush1.msra.mxu0 %v818
    %1013 = vmatprep.subr.mxu0 0.0
    %1014 = vmatpush1.msra.mxu0 %v819
    %1015 = vmatprep.subr.mxu0 0.0
    %1016 = vmatpush1.msra.mxu0 %v820
    %1017 = vmatprep.subr.mxu0 0.0
    %1018 = vmatpush1.msra.mxu0 %v821
    %1019 = vmatprep.subr.mxu0 0.0
    %1020 = vmatpush1.msra.mxu0 %v822
    %1021 = vmatprep.subr.mxu0 0.0
    %1022 = vmatpush1.msra.mxu0 %v823
    %1023 = vmatprep.subr.mxu0 0.0
    %1024 = vmatpush1.msra.mxu0 %v824
    %1025 = vmatprep.subr.mxu0 0.0
    %1026 = vmatpush1.msra.mxu0 %v825
    %1027 = vmatprep.subr.mxu0 0.0
    %1028 = vmatpush1.msra.mxu0 %v826
    %1029 = vmatprep.subr.mxu0 0.0
    %1030 = vmatpush1.msra.mxu0 %v827
    %1031 = vmatprep.subr.mxu0 0.0
    %1032 = vmatpush1.msra.mxu0 %v828
    %1033 = vmatprep.subr.mxu0 0.0
    %1034 = vmatpush1.msra.mxu0 %v829
    %1035 = vmatprep.subr.mxu0 0.0
    %1036 = vmatpush1.msra.mxu0 %v830
    %1037 = vmatprep.subr.mxu0 0.0
    %1038 = vmatpush1.msra.mxu0 %v831
    %1039 = vmatprep.subr.mxu0 0.0
    %1040 = vmatpush1.msra.mxu0 %v832
    %1041 = vmatprep.subr.mxu0 0.0
    %1042 = vmatpush1.msra.mxu0 %v833
    %1043 = vmatprep.subr.mxu0 0.0
    %1044 = vmatpush1.msra.mxu0 %v834
    %1045 = vmatprep.subr.mxu0 0.0
    %1046 = vmatpush1.msra.mxu0 %v835
    %1047 = vmatprep.subr.mxu0 0.0
    %1048 = vmatpush1.msra.mxu0 %v836
    %1049 = vmatprep.subr.mxu0 0.0
    %1050 = vmatpush1.msra.mxu0 %v837
    %1051 = vmatprep.subr.mxu0 0.0
    %1052 = vmatpush1.msra.mxu0 %v838
    %1053 = vmatprep.subr.mxu0 0.0
    %1054 = vmatpush1.msra.mxu0 %v839
    %1055 = vmatprep.subr.mxu0 0.0
    %1056 = vmatpush1.msra.mxu0 %v840
    %1057 = vmatprep.subr.mxu0 0.0
    %1058 = vmatpush1.msra.mxu0 %v841
    %1059 = vmatprep.subr.mxu0 0.0
    %1060 = vmatpush1.msra.mxu0 %v842
    %1061 = vmatprep.subr.mxu0 0.0
    %1062 = vmatpush1.msra.mxu0 %v843
    %1063 = vmatprep.subr.mxu0 0.0
    %1064 = vmatpush1.msra.mxu0 %v844
    %1065 = vmatprep.mubr.f32.mxu0 %v752
    %1066 = vmatmul.mubr.f32.gmra.mrb[0].mxu0 %v751
    %v1067 = vpop.f32.mrb[0].mxu0
    %v1068 = vadd.f32 %v983, %v1067
    %v1069 = vpop.f32.mrb[0].mxu0
    %1070 = vmatprep.mubr.f32.mxu0 %v760
    %1071 = vmatmul.mubr.f32.gmra.mrb[0].mxu0 %v759
    %v1072 = vpop.f32.mrb[0].mxu0
    %v1073 = vadd.f32 %v988, %v1072
    %v1074 = vpop.f32.mrb[0].mxu0
    %1075 = vmatprep.mubr.f32.mxu0 %v768
    %1076 = vmatmul.mubr.f32.gmra.mrb[0].mxu0 %v767
    %v1077 = vpop.f32.mrb[0].mxu0
    %v1078 = vadd.f32 %v993, %v1077
    %v1079 = vpop.f32.mrb[0].mxu0
    %1080 = vmatprep.mubr.f32.mxu0 %v776
    %1081 = vmatmul.mubr.f32.gmra.mrb[0].mxu0 %v775
    %v1082 = vpop.f32.mrb[0].mxu0
    %v1083 = vadd.f32 %v998, %v1082
    %v1084 = vpop.f32.mrb[0].mxu0
    %1085 = vdwg.mxu0
    %1086 = vmatprep.subr.mxu0 0.0
    %1087 = vmatpush1.msra.mxu0 %v845
    %1088 = vmatprep.subr.mxu0 0.0
    %1089 = vmatpush1.msra.mxu0 %v846
    %1090 = vmatprep.subr.mxu0 0.0
    %1091 = vmatpush1.msra.mxu0 %v847
    %1092 = vmatprep.subr.mxu0 0.0
    %1093 = vmatpush1.msra.mxu0 %v848
    %1094 = vmatprep.subr.mxu0 0.0
    %1095 = vmatpush1.msra.mxu0 %v849
    %1096 = vmatprep.subr.mxu0 0.0
    %1097 = vmatpush1.msra.mxu0 %v850
    %1098 = vmatprep.subr.mxu0 0.0
    %1099 = vmatpush1.msra.mxu0 %v851
    %1100 = vmatprep.subr.mxu0 0.0
    %1101 = vmatpush1.msra.mxu0 %v852
    %1102 = vmatprep.subr.mxu0 0.0
    %1103 = vmatpush1.msra.mxu0 %v853
    %1104 = vmatprep.subr.mxu0 0.0
    %1105 = vmatpush1.msra.mxu0 %v854
    %1106 = vmatprep.subr.mxu0 0.0
    %1107 = vmatpush1.msra.mxu0 %v855
    %1108 = vmatprep.subr.mxu0 0.0
    %1109 = vmatpush1.msra.mxu0 %v856
    %1110 = vmatprep.subr.mxu0 0.0
    %1111 = vmatpush1.msra.mxu0 %v857
    %1112 = vmatprep.subr.mxu0 0.0
    %1113 = vmatpush1.msra.mxu0 %v858
    %1114 = vmatprep.subr.mxu0 0.0
    %1115 = vmatpush1.msra.mxu0 %v859
    %1116 = vmatprep.subr.mxu0 0.0
    %1117 = vmatpush1.msra.mxu0 %v860
    %1118 = vmatprep.subr.mxu0 0.0
    %1119 = vmatpush1.msra.mxu0 %v861
    %1120 = vmatprep.subr.mxu0 0.0
    %1121 = vmatpush1.msra.mxu0 %v862
    %1122 = vmatprep.subr.mxu0 0.0
    %1123 = vmatpush1.msra.mxu0 %v863
    %1124 = vmatprep.subr.mxu0 0.0
    %1125 = vmatpush1.msra.mxu0 %v864
    %1126 = vmatprep.subr.mxu0 0.0
    %1127 = vmatpush1.msra.mxu0 %v865
    %1128 = vmatprep.subr.mxu0 0.0
    %1129 = vmatpush1.msra.mxu0 %v866
    %1130 = vmatprep.subr.mxu0 0.0
    %1131 = vmatpush1.msra.mxu0 %v867
    %1132 = vmatprep.subr.mxu0 0.0
    %1133 = vmatpush1.msra.mxu0 %v868
    %1134 = vmatprep.subr.mxu0 0.0
    %1135 = vmatpush1.msra.mxu0 %v869
    %1136 = vmatprep.subr.mxu0 0.0
    %1137 = vmatpush1.msra.mxu0 %v870
    %1138 = vmatprep.subr.mxu0 0.0
    %1139 = vmatpush1.msra.mxu0 %v871
    %1140 = vmatprep.subr.mxu0 0.0
    %1141 = vmatpush1.msra.mxu0 %v872
    %1142 = vmatprep.subr.mxu0 0.0
    %1143 = vmatpush1.msra.mxu0 %v873
    %1144 = vmatprep.subr.mxu0 0.0
    %1145 = vmatpush1.msra.mxu0 %v874
    %1146 = vmatprep.subr.mxu0 0.0
    %1147 = vmatpush1.msra.mxu0 %v875
    %1148 = vmatprep.subr.mxu0 0.0
    %1149 = vmatpush1.msra.mxu0 %v876
    %1150 = vmatprep.mubr.f32.mxu0 %v754
    %1151 = vmatmul.mubr.f32.gmra.mrb[0].mxu0 %v753
    %v1152 = vpop.f32.mrb[0].mxu0
    %v1153 = vadd.f32 %v1068, %v1152
    %v1154 = vpop.f32.mrb[0].mxu0
    %1155 = vmatprep.mubr.f32.mxu0 %v762
    %1156 = vmatmul.mubr.f32.gmra.mrb[0].mxu0 %v761
    %v1157 = vpop.f32.mrb[0].mxu0
    %v1158 = vadd.f32 %v1073, %v1157
    %v1159 = vpop.f32.mrb[0].mxu0
    %1160 = vmatprep.mubr.f32.mxu0 %v770
    %1161 = vmatmul.mubr.f32.gmra.mrb[0].mxu0 %v769
    %v1162 = vpop.f32.mrb[0].mxu0
    %v1163 = vadd.f32 %v1078, %v1162
    %v1164 = vpop.f32.mrb[0].mxu0
    %1165 = vmatprep.mubr.f32.mxu0 %v778
    %1166 = vmatmul.mubr.f32.gmra.mrb[0].mxu0 %v777
    %v1167 = vpop.f32.mrb[0].mxu0
    %v1168 = vadd.f32 %v1083, %v1167
    %v1169 = vpop.f32.mrb[0].mxu0
    %1170 = vdwg.mxu0
    %1171 = vmatprep.subr.mxu0 0.0
    %1172 = vmatpush1.msra.mxu0 %v877
    %1173 = vmatprep.subr.mxu0 0.0
    %1174 = vmatpush1.msra.mxu0 %v878
    %1175 = vmatprep.subr.mxu0 0.0
    %1176 = vmatpush1.msra.mxu0 %v879
    %1177 = vmatprep.subr.mxu0 0.0
    %1178 = vmatpush1.msra.mxu0 %v880
    %1179 = vmatprep.subr.mxu0 0.0
    %1180 = vmatpush1.msra.mxu0 %v881
    %1181 = vmatprep.subr.mxu0 0.0
    %1182 = vmatpush1.msra.mxu0 %v882
    %1183 = vmatprep.subr.mxu0 0.0
    %1184 = vmatpush1.msra.mxu0 %v883
    %1185 = vmatprep.subr.mxu0 0.0
    %1186 = vmatpush1.msra.mxu0 %v884
    %1187 = vmatprep.subr.mxu0 0.0
    %1188 = vmatpush1.msra.mxu0 %v885
    %1189 = vmatprep.subr.mxu0 0.0
    %1190 = vmatpush1.msra.mxu0 %v886
    %1191 = vmatprep.subr.mxu0 0.0
    %1192 = vmatpush1.msra.mxu0 %v887
    %1193 = vmatprep.subr.mxu0 0.0
    %1194 = vmatpush1.msra.mxu0 %v888
    %1195 = vmatprep.subr.mxu0 0.0
    %1196 = vmatpush1.msra.mxu0 %v889
    %1197 = vmatprep.subr.mxu0 0.0
    %1198 = vmatpush1.msra.mxu0 %v890
    %1199 = vmatprep.subr.mxu0 0.0
    %1200 = vmatpush1.msra.mxu0 %v891
    %1201 = vmatprep.subr.mxu0 0.0
    %1202 = vmatpush1.msra.mxu0 %v892
    %1203 = vmatprep.subr.mxu0 0.0
    %1204 = vmatpush1.msra.mxu0 %v893
    %1205 = vmatprep.subr.mxu0 0.0
    %1206 = vmatpush1.msra.mxu0 %v894
    %1207 = vmatprep.subr.mxu0 0.0
    %1208 = vmatpush1.msra.mxu0 %v895
    %1209 = vmatprep.subr.mxu0 0.0
    %1210 = vmatpush1.msra.mxu0 %v896
    %1211 = vmatprep.subr.mxu0 0.0
    %1212 = vmatpush1.msra.mxu0 %v897
    %1213 = vmatprep.subr.mxu0 0.0
    %1214 = vmatpush1.msra.mxu0 %v898
    %1215 = vmatprep.subr.mxu0 0.0
    %1216 = vmatpush1.msra.mxu0 %v899
    %1217 = vmatprep.subr.mxu0 0.0
    %1218 = vmatpush1.msra.mxu0 %v900
    %1219 = vmatprep.subr.mxu0 0.0
    %1220 = vmatpush1.msra.mxu0 %v901
    %1221 = vmatprep.subr.mxu0 0.0
    %1222 = vmatpush1.msra.mxu0 %v902
    %1223 = vmatprep.subr.mxu0 0.0
    %1224 = vmatpush1.msra.mxu0 %v903
    %1225 = vmatprep.subr.mxu0 0.0
    %1226 = vmatpush1.msra.mxu0 %v904
    %1227 = vmatprep.subr.mxu0 0.0
    %1228 = vmatpush1.msra.mxu0 %v905
    %1229 = vmatprep.subr.mxu0 0.0
    %1230 = vmatpush1.msra.mxu0 %v906
    %1231 = vmatprep.subr.mxu0 0.0
    %1232 = vmatpush1.msra.mxu0 %v907
    %1233 = vmatprep.subr.mxu0 0.0
    %1234 = vmatpush1.msra.mxu0 %v908
    %1235 = vmatprep.mubr.f32.mxu0 %v756
    %1236 = vmatmul.mubr.f32.gmra.mrb[0].mxu0 %v755
    %v1237 = vpop.f32.mrb[0].mxu0
    %v1238 = vadd.f32 %v1153, %v1237
    %v1239 = vpop.f32.mrb[0].mxu0
    %1240 = vmatprep.mubr.f32.mxu0 %v764
    %1241 = vmatmul.mubr.f32.gmra.mrb[0].mxu0 %v763
    %v1242 = vpop.f32.mrb[0].mxu0
    %v1243 = vadd.f32 %v1158, %v1242
    %v1244 = vpop.f32.mrb[0].mxu0
    %1245 = vmatprep.mubr.f32.mxu0 %v772
    %1246 = vmatmul.mubr.f32.gmra.mrb[0].mxu0 %v771
    %v1247 = vpop.f32.mrb[0].mxu0
    %v1248 = vadd.f32 %v1163, %v1247
    %v1249 = vpop.f32.mrb[0].mxu0
    %1250 = vmatprep.mubr.f32.mxu0 %v780
    %1251 = vmatmul.mubr.f32.gmra.mrb[0].mxu0 %v779
    %v1252 = vpop.f32.mrb[0].mxu0
    %v1253 = vadd.f32 %v1168, %v1252
    %v1254 = vpop.f32.mrb[0].mxu0
    %1255 = vdwg.mxu0
    %1256 = vst [vmem:[%s5] sm:$0xff] %v1238
    %1257 = vst [vmem:[%s5 + $0x8] sm:$0xff] %v1243
    %1258 = vst [vmem:[%s5 + $0x10] sm:$0xff] %v1248
    %1259 = vst [vmem:[%s5 + $0x18] sm:$0xff] %v1253
  $region29: #{pupil_model_forward.1} parent=0 // pred_fallthru
    _
  // Predicated region
  $region30: #{pupil_model_forward.1} parent=0 // pred_check
    _
  $region31: #{pupil_model_forward.1} parent=0 // pred_check_branch
    %1261 = sbr.rel (0) target = $region33
  $region32: #{pupil_model_forward.1} parent=0 // pred_region
    _
  $region33: #{pupil_model_forward.1} parent=0 // pred_fallthru
    _
  // Predicated region
  $region34: #{pupil_model_forward.1} parent=0 // pred_check
    _
  $region35: #{pupil_model_forward.1} parent=0 // pred_check_branch
    %1263 = sbr.rel (0) target = $region37
  $region36: #{pupil_model_forward.1} parent=0 // pred_region
    _
  $region37: #{pupil_model_forward.1} parent=0 // pred_fallthru
    _

</llo_original>
